<compile_context>
chip_gen: v5e
topology: v5e:2x2
jax: 0.10.0
libtpu: 0.0.40
codegen_flags: <defaults>
</compile_context>

<pallas_src>
import functools

import jax
import jax.numpy as jnp
from jax import lax
from jax.experimental import pallas as pl
from jax.experimental.pallas import tpu as pltpu

INPUT_SIZE = 28      # vocab size (one-hot dim in the PyTorch model)
VOCAB_PAD = 32       # padded vocab rows for the in-kernel table matmul
HIDDEN = 128
NUM_LAYERS = 2
NUM_CLASSES = 15
C_PAD = 128          # lane-dense padded class dim (sliced back to 15 outside)
LN_EPS = 1e-5


def newsrnn_kernel(xoh_ref,                   # (Tc, Bt, VOCAB_PAD) bf16 one-hot tokens
                   wemb_ref,                  # (VOCAB_PAD, H) bf16: W_ih1 rows + b1, zero pad rows
                   whh1_ref,                  # (H, H)  bf16
                   w2_ref,                    # (2H, H) bf16 = concat([W_ih2, W_hh2])
                   b2_ref,                    # (1, H)  f32
                   ln_g_ref, ln_b_ref,        # (1, H)  f32
                   wfc1_ref, bfc1_ref,        # (H, H) bf16, (1, H) f32
                   wfc2_ref, bfc2_ref,        # (H, C_PAD) bf16, (1, C_PAD) f32
                   out_ref,                   # (Bt, C_PAD) f32
                   h1_scr, h2_scr,            # (Bt, H) f32 VMEM scratch (carried over t)
                   *, n_pad_t, split_l2, unroll):
    tc = xoh_ref.shape[0]
    bt = h1_scr.shape[0]
    t_idx = pl.program_id(1)

    # new batch block starts -> reset the carried hidden state
    @pl.when(t_idx == 0)
    def _():
        h1_scr[...] = jnp.zeros_like(h1_scr)
        h2_scr[...] = jnp.zeros_like(h2_scr)

    wemb = wemb_ref[...]              # resident bf16 weights
    whh1 = whh1_ref[...]
    if split_l2:                      # v5e: two K=128 dots, no per-step concat
        wih2 = w2_ref[:HIDDEN, :]
        whh2 = w2_ref[HIDDEN:, :]
    else:                             # v6e/v7x: one fused K=256 dot
        w2 = w2_ref[...]
    # hoisted: JAX does not CSE broadcast_in_dim inside the loop
    b2_b = jnp.broadcast_to(b2_ref[...], (bt, HIDDEN))
    t_base = t_idx * tc

    def step(i, carry):
        h1, h2 = carry                                   # f32 (Bt, H)
        xoh = xoh_ref[i]                                 # (Bt, VOCAB_PAD) bf16
        # input projection rebuilt in-kernel: W_ih1[token] + b1 (0 for pad steps)
        xp = jnp.dot(xoh, wemb, preferred_element_type=jnp.float32)
        # layer 1
        a1 = jnp.dot(h1.astype(jnp.bfloat16), whh1,
                     preferred_element_type=jnp.float32) + xp
        h1n = jnp.maximum(a1, 0.0)
        h1b = h1n.astype(jnp.bfloat16)
        h2b = h2.astype(jnp.bfloat16)
        # layer 2
        if split_l2:
            a2 = (jnp.dot(h1b, wih2, preferred_element_type=jnp.float32)
                  + jnp.dot(h2b, whh2, preferred_element_type=jnp.float32)
                  + b2_b)
        else:
            cat = jnp.concatenate([h1b, h2b], axis=-1)
            a2 = jnp.dot(cat, w2, preferred_element_type=jnp.float32) + b2_b
        h2n = jnp.maximum(a2, 0.0)
        if n_pad_t > 0:
            # left-padded time steps: keep h1/h2 identically zero (exact) until
            # the first real token; emitted only when padding actually exists.
            keep = (t_base + i >= n_pad_t).astype(jnp.float32)
            h1n = h1n * keep
            h2n = h2n * keep
        return h1n, h2n

    h1, h2 = lax.fori_loop(0, tc, step, (h1_scr[...], h2_scr[...]),
                           unroll=unroll)
    h1_scr[...] = h1
    h2_scr[...] = h2

    # classifier + output store only on the final timestep block
    @pl.when(t_idx == pl.num_programs(1) - 1)
    def _():
        h_last = h2                                      # top layer, last timestep
        mean = jnp.mean(h_last, axis=-1, keepdims=True)
        var = jnp.mean((h_last - mean) ** 2, axis=-1, keepdims=True)
        xn = (h_last - mean) * lax.rsqrt(var + LN_EPS)
        y = xn * ln_g_ref[...] + ln_b_ref[...]
        y = jnp.maximum(
            jnp.dot(y.astype(jnp.bfloat16), wfc1_ref[...],
                    preferred_element_type=jnp.float32) + bfc1_ref[...], 0.0)
        logits = (jnp.dot(y.astype(jnp.bfloat16), wfc2_ref[...],
                          preferred_element_type=jnp.float32) + bfc2_ref[...])
        out_ref[...] = logits.astype(out_ref.dtype)


def init_params(key):
    """Deterministic init mirroring nn.RNN / nn.Linear conventions
    (weights stored transposed as (in, out); RNN b_ih + b_hh folded)."""
    k = 1.0 / jnp.sqrt(jnp.float32(HIDDEN))
    keys = jax.random.split(key, 16)
    u = lambda kk, shape: jax.random.uniform(kk, shape, jnp.float32, -k, k)
    return dict(
        wih1=u(keys[0], (INPUT_SIZE, HIDDEN)),
        whh1=u(keys[1], (HIDDEN, HIDDEN)),
        b1=u(keys[2], (1, HIDDEN)) + u(keys[3], (1, HIDDEN)),
        wih2=u(keys[4], (HIDDEN, HIDDEN)),
        whh2=u(keys[5], (HIDDEN, HIDDEN)),
        b2=u(keys[6], (1, HIDDEN)) + u(keys[7], (1, HIDDEN)),
        ln_g=jnp.ones((1, HIDDEN), jnp.float32),
        ln_b=jnp.zeros((1, HIDDEN), jnp.float32),
        wfc1=u(keys[8], (HIDDEN, HIDDEN)),
        bfc1=u(keys[9], (1, HIDDEN)),
        wfc2=u(keys[10], (HIDDEN, NUM_CLASSES)),
        bfc2=u(keys[11], (1, NUM_CLASSES)),
    )


def _prepare_kernel_params(params):
    """Fold / cast / pad parameters into the layout the kernel consumes."""
    wemb = jnp.zeros((VOCAB_PAD, HIDDEN), jnp.float32)
    wemb = wemb.at[:INPUT_SIZE].set(params["wih1"] + params["b1"])  # b1 folded, pad rows zero
    return dict(
        wemb=wemb.astype(jnp.bfloat16),
        whh1=params["whh1"].astype(jnp.bfloat16),
        w2=jnp.concatenate([params["wih2"], params["whh2"]],
                           axis=0).astype(jnp.bfloat16),            # (2H, H)
        b2=params["b2"],
        ln_g=params["ln_g"],
        ln_b=params["ln_b"],
        wfc1=params["wfc1"].astype(jnp.bfloat16),
        bfc1=params["bfc1"],
        wfc2=jnp.pad(params["wfc2"],
                     ((0, 0), (0, C_PAD - NUM_CLASSES))).astype(jnp.bfloat16),
        bfc2=jnp.pad(params["bfc2"], ((0, 0), (0, C_PAD - NUM_CLASSES))),
    )


def _ceil_to(x, m):
    return -(-x // m) * m


def _device_flags():
    kind = ""
    try:
        kind = jax.devices()[0].device_kind.lower()
    except Exception:
        pass
    two_tc = ("v7" in kind) or ("7x" in kind)   # v7x: 2 TensorCores per chip
    split_l2 = "v5" in kind                     # v5e: 128-deep MXU, avoid per-step concat
    return two_tc, split_l2


def _batch_tiling(B, min_tiles, bt_max=256):
    """Pad B and pick a batch tile (multiple of 16 sublane-rows, <= bt_max)."""
    n_tiles = max(min_tiles, -(-_ceil_to(B, 16) // bt_max))
    bt = _ceil_to(-(-B // n_tiles), 16)
    return bt * n_tiles, bt


def _time_tiling(T, Bt):
    """nt blocks of Tc, left-padding T by < nt steps (never collapses to Tc=1).
    Tc capped so a (Tc, Bt, 32->128 lane-padded) bf16 block stays <= ~4 MiB."""
    tc_cap = max(8, min(128, (4 * 1024 * 1024) // (Bt * 128 * 2)))
    nt = -(-T // tc_cap)
    tc = -(-T // nt)
    return nt, tc, nt * tc - T


def _vmem_limit_bytes():
    # Generation-aware scoped VMEM limit: kernel needs < ~10 MiB, so stay well
    # under v7x's 64 MiB physical VMEM (and v5e/v6e's 128 MiB).
    phys = 128 * 1024 * 1024
    try:
        phys = int(pltpu.get_tpu_info().vmem_capacity_bytes)
    except Exception:
        pass
    return min(32 * 1024 * 1024, phys // 2)


def newsrnn_forward(x_tokens, params, labels=None):
    """x_tokens: int32 (B, T) token ids in [0, INPUT_SIZE)."""
    B, T = x_tokens.shape
    two_tc, split_l2 = _device_flags()

    B_pad, Bt = _batch_tiling(B, 2 if two_tc else 1)
    nb = B_pad // Bt
    nt, Tc, n_pad_t = _time_tiling(T, Bt)

    kp = _prepare_kernel_params(params)

    # Compact input stream: time-major bf16 one-hot (T_pad, B_pad, 32), LEFT-padded
    # in time with a token that selects an all-zero (W_ih1+b1) table row.
    x_tm = x_tokens.T.astype(jnp.int32)                       # (T, B)
    x_tm = jnp.pad(x_tm, ((n_pad_t, 0), (0, B_pad - B)),
                   constant_values=INPUT_SIZE)                # pad token -> zero row
    x_oh = jax.nn.one_hot(x_tm, VOCAB_PAD, dtype=jnp.bfloat16)  # (T_pad, B_pad, 32)

    unroll = 2 if Bt >= 128 else (4 if Bt > 32 else 8)
    unroll = max(1, min(unroll, Tc))

    kernel = functools.partial(newsrnn_kernel, n_pad_t=n_pad_t,
                               split_l2=split_l2, unroll=unroll)

    grid_spec = pltpu.PrefetchScalarGridSpec(
        num_scalar_prefetch=0,
        grid=(nb, nt),
        in_specs=[
            pl.BlockSpec((Tc, Bt, VOCAB_PAD), lambda b, t: (t, b, 0)),   # one-hot tokens
            pl.BlockSpec((VOCAB_PAD, HIDDEN), lambda b, t: (0, 0)),      # wemb (W_ih1+b1)
            pl.BlockSpec((HIDDEN, HIDDEN), lambda b, t: (0, 0)),         # whh1
            pl.BlockSpec((2 * HIDDEN, HIDDEN), lambda b, t: (0, 0)),     # w2
            pl.BlockSpec((1, HIDDEN), lambda b, t: (0, 0)),              # b2
            pl.BlockSpec((1, HIDDEN), lambda b, t: (0, 0)),              # ln_g
            pl.BlockSpec((1, HIDDEN), lambda b, t: (0, 0)),              # ln_b
            pl.BlockSpec((HIDDEN, HIDDEN), lambda b, t: (0, 0)),         # wfc1
            pl.BlockSpec((1, HIDDEN), lambda b, t: (0, 0)),              # bfc1
            pl.BlockSpec((HIDDEN, C_PAD), lambda b, t: (0, 0)),          # wfc2
            pl.BlockSpec((1, C_PAD), lambda b, t: (0, 0)),               # bfc2
        ],
        out_specs=pl.BlockSpec((Bt, C_PAD), lambda b, t: (b, 0)),
        scratch_shapes=[pltpu.VMEM((Bt, HIDDEN), jnp.float32),
                        pltpu.VMEM((Bt, HIDDEN), jnp.float32)],
    )

    logits_pad = pl.pallas_call(
        kernel,
        out_shape=jax.ShapeDtypeStruct((B_pad, C_PAD), jnp.float32),
        grid_spec=grid_spec,
        compiler_params=pltpu.CompilerParams(
            dimension_semantics=("parallel", "arbitrary"),
            vmem_limit_bytes=_vmem_limit_bytes()),
    )(x_oh, kp["wemb"], kp["whh1"], kp["w2"], kp["b2"], kp["ln_g"], kp["ln_b"],
      kp["wfc1"], kp["bfc1"], kp["wfc2"], kp["bfc2"])

    logits = logits_pad[:B, :NUM_CLASSES]

    if labels is not None:
        # mean cross-entropy, same as nn.CrossEntropyLoss(reduction='mean')
        logp = jax.nn.log_softmax(logits, axis=-1)
        loss = -jnp.mean(jnp.take_along_axis(logp, labels[:, None], axis=-1))
        return loss, logits
    return logits


if __name__ == "__main__":
    key = jax.random.PRNGKey(0)
    pkey, xkey, lkey = jax.random.split(key, 3)

    params = init_params(pkey)

    B, T = 2, 8
    x_tokens = jax.random.randint(xkey, (B, T), 0, INPUT_SIZE, dtype=jnp.int32)
    labels = jax.random.randint(lkey, (B,), 0, NUM_CLASSES, dtype=jnp.int32)

    logits = newsrnn_forward(x_tokens, params)
    logits = jax.block_until_ready(logits)

    loss, _ = newsrnn_forward(x_tokens, params, labels=labels)
    loss = jax.block_until_ready(loss)

    assert logits.shape == (B, NUM_CLASSES)
    assert jnp.all(jnp.isfinite(logits)) and jnp.isfinite(loss)
    print("KERNEL_OK")
</pallas_src>

<mosaic_0001>
module attributes {stable_mosaic.version = 11 : i64} {
  func.func @newsrnn_kernel(%arg0: i32, %arg1: i32, %arg2: memref<8x16x32xbf16, #tpu.memory_space<vmem>>, %arg3: memref<32x128xbf16, #tpu.memory_space<vmem>>, %arg4: memref<128x128xbf16, #tpu.memory_space<vmem>>, %arg5: memref<256x128xbf16, #tpu.memory_space<vmem>>, %arg6: memref<1x128xf32, #tpu.memory_space<vmem>>, %arg7: memref<1x128xf32, #tpu.memory_space<vmem>>, %arg8: memref<1x128xf32, #tpu.memory_space<vmem>>, %arg9: memref<128x128xbf16, #tpu.memory_space<vmem>>, %arg10: memref<1x128xf32, #tpu.memory_space<vmem>>, %arg11: memref<128x128xbf16, #tpu.memory_space<vmem>>, %arg12: memref<1x128xf32, #tpu.memory_space<vmem>>, %arg13: memref<16x128xf32, #tpu.memory_space<vmem>>, %arg14: memref<16x128xf32, #tpu.memory_space<vmem>>, %arg15: memref<16x128xf32, #tpu.memory_space<vmem>>) attributes {dimension_semantics = [#tpu.dimension_semantics<parallel>, #tpu.dimension_semantics<arbitrary>], iteration_bounds = array<i64: 1, 1>, scalar_prefetch = 0 : i64, scratch_operands = 2 : i64, tpu.core_type = #tpu.core_type<tc>, window_params = [{transform_indices = @transform_0, window_bounds = array<i64: 8, 16, 32>}, {pipeline_mode = #tpu.pipeline_mode<synchronous>, transform_indices = @transform_1, window_bounds = array<i64: 32, 128>}, {pipeline_mode = #tpu.pipeline_mode<synchronous>, transform_indices = @transform_2, window_bounds = array<i64: 128, 128>}, {pipeline_mode = #tpu.pipeline_mode<synchronous>, transform_indices = @transform_3, window_bounds = array<i64: 256, 128>}, {pipeline_mode = #tpu.pipeline_mode<synchronous>, transform_indices = @transform_4, window_bounds = array<i64: 1, 128>}, {pipeline_mode = #tpu.pipeline_mode<synchronous>, transform_indices = @transform_5, window_bounds = array<i64: 1, 128>}, {pipeline_mode = #tpu.pipeline_mode<synchronous>, transform_indices = @transform_6, window_bounds = array<i64: 1, 128>}, {pipeline_mode = #tpu.pipeline_mode<synchronous>, transform_indices = @transform_7, window_bounds = array<i64: 128, 128>}, {pipeline_mode = #tpu.pipeline_mode<synchronous>, transform_indices = @transform_8, window_bounds = array<i64: 1, 128>}, {pipeline_mode = #tpu.pipeline_mode<synchronous>, transform_indices = @transform_9, window_bounds = array<i64: 128, 128>}, {pipeline_mode = #tpu.pipeline_mode<synchronous>, transform_indices = @transform_10, window_bounds = array<i64: 1, 128>}, {transform_indices = @transform_11, window_bounds = array<i64: 16, 128>}]} {
    %c0_i32 = arith.constant 0 : i32
    %0 = arith.cmpi eq, %arg1, %c0_i32 : i32
    %1 = arith.extui %0 : i1 to i32
    %c0_i32_0 = arith.constant 0 : i32
    %2 = arith.cmpi ne, %1, %c0_i32_0 : i32
    scf.if %2 {
      %cst_74 = arith.constant 0.000000e+00 : f32
      %144 = vector.broadcast %cst_74 : f32 to vector<16x128xf32>
      %c0_75 = arith.constant 0 : index
      %c0_76 = arith.constant 0 : index
      %145 = vector.load %arg14[%c0_75, %c0_76] : memref<16x128xf32, #tpu.memory_space<vmem>>, vector<16x128xf32>
      tpu.vector_store %arg14[%c0_75, %c0_76], %144 {strides = array<i32>} : memref<16x128xf32, #tpu.memory_space<vmem>>, vector<16x128xf32>,
      %cst_77 = arith.constant 0.000000e+00 : f32
      %146 = vector.broadcast %cst_77 : f32 to vector<16x128xf32>
      %c0_78 = arith.constant 0 : index
      %c0_79 = arith.constant 0 : index
      %147 = vector.load %arg15[%c0_78, %c0_79] : memref<16x128xf32, #tpu.memory_space<vmem>>, vector<16x128xf32>
      tpu.vector_store %arg15[%c0_78, %c0_79], %146 {strides = array<i32>} : memref<16x128xf32, #tpu.memory_space<vmem>>, vector<16x128xf32>,
    } else {
    }
    %c0 = arith.constant 0 : index
    %c0_1 = arith.constant 0 : index
    %3 = vector.load %arg3[%c0, %c0_1] : memref<32x128xbf16, #tpu.memory_space<vmem>>, vector<32x128xbf16>
    %c0_2 = arith.constant 0 : index
    %c0_3 = arith.constant 0 : index
    %4 = vector.load %arg4[%c0_2, %c0_3] : memref<128x128xbf16, #tpu.memory_space<vmem>>, vector<128x128xbf16>
    %c0_4 = arith.constant 0 : index
    %c0_5 = arith.constant 0 : index
    %5 = vector.load %arg5[%c0_4, %c0_5] : memref<256x128xbf16, #tpu.memory_space<vmem>>, vector<256x128xbf16>
    %c0_6 = arith.constant 0 : index
    %c0_7 = arith.constant 0 : index
    %6 = vector.load %arg6[%c0_6, %c0_7] : memref<1x128xf32, #tpu.memory_space<vmem>>, vector<1x128xf32>
    %7 = vector.shape_cast %6 : vector<1x128xf32> to vector<1x128xf32>
    %8 = vector.broadcast %7 : vector<1x128xf32> to vector<16x128xf32>
    %c0_8 = arith.constant 0 : index
    %c0_9 = arith.constant 0 : index
    %9 = vector.load %arg14[%c0_8, %c0_9] : memref<16x128xf32, #tpu.memory_space<vmem>>, vector<16x128xf32>
    %c0_10 = arith.constant 0 : index
    %c0_11 = arith.constant 0 : index
    %10 = vector.load %arg15[%c0_10, %c0_11] : memref<16x128xf32, #tpu.memory_space<vmem>>, vector<16x128xf32>
    %c0_i32_12 = arith.constant 0 : i32
    %11 = arith.index_cast %c0_i32_12 : i32 to index
    %c0_13 = arith.constant 0 : index
    %c0_14 = arith.constant 0 : index
    %12 = vector.load %arg2[%11, %c0_13, %c0_14] : memref<8x16x32xbf16, #tpu.memory_space<vmem>>, vector<1x16x32xbf16>
    %13 = vector.shape_cast %12 : vector<1x16x32xbf16> to vector<16x32xbf16>
    %cst = arith.constant dense<0.000000e+00> : vector<16x128xf32>
    %14 = tpu.matmul %13, %3, %cst {dimension_numbers = #tpu.dot_dimension_numbers<[1], [0], [0], [1], [0, 0, 1, 1], [], []>} : vector<16x32xbf16>, vector<32x128xbf16>, vector<16x128xf32> -> vector<16x128xf32>
    %15 = arith.truncf %9 : vector<16x128xf32> to vector<16x128xbf16>
    %cst_15 = arith.constant dense<0.000000e+00> : vector<16x128xf32>
    %16 = tpu.matmul %15, %4, %cst_15 {dimension_numbers = #tpu.dot_dimension_numbers<[1], [0], [0], [1], [0, 0, 1, 1], [], []>} : vector<16x128xbf16>, vector<128x128xbf16>, vector<16x128xf32> -> vector<16x128xf32>
    %17 = arith.addf %16, %14 : vector<16x128xf32>
    %cst_16 = arith.constant 0.000000e+00 : f32
    %18 = vector.broadcast %cst_16 : f32 to vector<16x128xf32>
    %19 = arith.maximumf %17, %18 : vector<16x128xf32>
    %20 = arith.truncf %19 : vector<16x128xf32> to vector<16x128xbf16>
    %21 = arith.truncf %10 : vector<16x128xf32> to vector<16x128xbf16>
    %22 = tpu.concatenate %20, %21 in 1 : vector<16x128xbf16>, vector<16x128xbf16> -> vector<16x256xbf16>
    %cst_17 = arith.constant dense<0.000000e+00> : vector<16x128xf32>
    %23 = tpu.matmul %22, %5, %cst_17 {dimension_numbers = #tpu.dot_dimension_numbers<[1], [0], [0], [1], [0, 0, 1, 1], [], []>} : vector<16x256xbf16>, vector<256x128xbf16>, vector<16x128xf32> -> vector<16x128xf32>
    %24 = arith.addf %23, %8 : vector<16x128xf32>
    %cst_18 = arith.constant 0.000000e+00 : f32
    %25 = vector.broadcast %cst_18 : f32 to vector<16x128xf32>
    %26 = arith.maximumf %24, %25 : vector<16x128xf32>
    %c1_i32 = arith.constant 1 : i32
    %27 = arith.index_cast %c1_i32 : i32 to index
    %c0_19 = arith.constant 0 : index
    %c0_20 = arith.constant 0 : index
    %28 = vector.load %arg2[%27, %c0_19, %c0_20] : memref<8x16x32xbf16, #tpu.memory_space<vmem>>, vector<1x16x32xbf16>
    %29 = vector.shape_cast %28 : vector<1x16x32xbf16> to vector<16x32xbf16>
    %cst_21 = arith.constant dense<0.000000e+00> : vector<16x128xf32>
    %30 = tpu.matmul %29, %3, %cst_21 {dimension_numbers = #tpu.dot_dimension_numbers<[1], [0], [0], [1], [0, 0, 1, 1], [], []>} : vector<16x32xbf16>, vector<32x128xbf16>, vector<16x128xf32> -> vector<16x128xf32>
    %31 = arith.truncf %19 : vector<16x128xf32> to vector<16x128xbf16>
    %cst_22 = arith.constant dense<0.000000e+00> : vector<16x128xf32>
    %32 = tpu.matmul %31, %4, %cst_22 {dimension_numbers = #tpu.dot_dimension_numbers<[1], [0], [0], [1], [0, 0, 1, 1], [], []>} : vector<16x128xbf16>, vector<128x128xbf16>, vector<16x128xf32> -> vector<16x128xf32>
    %33 = arith.addf %32, %30 : vector<16x128xf32>
    %cst_23 = arith.constant 0.000000e+00 : f32
    %34 = vector.broadcast %cst_23 : f32 to vector<16x128xf32>
    %35 = arith.maximumf %33, %34 : vector<16x128xf32>
    %36 = arith.truncf %35 : vector<16x128xf32> to vector<16x128xbf16>
    %37 = arith.truncf %26 : vector<16x128xf32> to vector<16x128xbf16>
    %38 = tpu.concatenate %36, %37 in 1 : vector<16x128xbf16>, vector<16x128xbf16> -> vector<16x256xbf16>
    %cst_24 = arith.constant dense<0.000000e+00> : vector<16x128xf32>
    %39 = tpu.matmul %38, %5, %cst_24 {dimension_numbers = #tpu.dot_dimension_numbers<[1], [0], [0], [1], [0, 0, 1, 1], [], []>} : vector<16x256xbf16>, vector<256x128xbf16>, vector<16x128xf32> -> vector<16x128xf32>
    %40 = arith.addf %39, %8 : vector<16x128xf32>
    %cst_25 = arith.constant 0.000000e+00 : f32
    %41 = vector.broadcast %cst_25 : f32 to vector<16x128xf32>
    %42 = arith.maximumf %40, %41 : vector<16x128xf32>
    %c2_i32 = arith.constant 2 : i32
    %43 = arith.index_cast %c2_i32 : i32 to index
    %c0_26 = arith.constant 0 : index
    %c0_27 = arith.constant 0 : index
    %44 = vector.load %arg2[%43, %c0_26, %c0_27] : memref<8x16x32xbf16, #tpu.memory_space<vmem>>, vector<1x16x32xbf16>
    %45 = vector.shape_cast %44 : vector<1x16x32xbf16> to vector<16x32xbf16>
    %cst_28 = arith.constant dense<0.000000e+00> : vector<16x128xf32>
    %46 = tpu.matmul %45, %3, %cst_28 {dimension_numbers = #tpu.dot_dimension_numbers<[1], [0], [0], [1], [0, 0, 1, 1], [], []>} : vector<16x32xbf16>, vector<32x128xbf16>, vector<16x128xf32> -> vector<16x128xf32>
    %47 = arith.truncf %35 : vector<16x128xf32> to vector<16x128xbf16>
    %cst_29 = arith.constant dense<0.000000e+00> : vector<16x128xf32>
    %48 = tpu.matmul %47, %4, %cst_29 {dimension_numbers = #tpu.dot_dimension_numbers<[1], [0], [0], [1], [0, 0, 1, 1], [], []>} : vector<16x128xbf16>, vector<128x128xbf16>, vector<16x128xf32> -> vector<16x128xf32>
    %49 = arith.addf %48, %46 : vector<16x128xf32>
    %cst_30 = arith.constant 0.000000e+00 : f32
    %50 = vector.broadcast %cst_30 : f32 to vector<16x128xf32>
    %51 = arith.maximumf %49, %50 : vector<16x128xf32>
    %52 = arith.truncf %51 : vector<16x128xf32> to vector<16x128xbf16>
    %53 = arith.truncf %42 : vector<16x128xf32> to vector<16x128xbf16>
    %54 = tpu.concatenate %52, %53 in 1 : vector<16x128xbf16>, vector<16x128xbf16> -> vector<16x256xbf16>
    %cst_31 = arith.constant dense<0.000000e+00> : vector<16x128xf32>
    %55 = tpu.matmul %54, %5, %cst_31 {dimension_numbers = #tpu.dot_dimension_numbers<[1], [0], [0], [1], [0, 0, 1, 1], [], []>} : vector<16x256xbf16>, vector<256x128xbf16>, vector<16x128xf32> -> vector<16x128xf32>
    %56 = arith.addf %55, %8 : vector<16x128xf32>
    %cst_32 = arith.constant 0.000000e+00 : f32
    %57 = vector.broadcast %cst_32 : f32 to vector<16x128xf32>
    %58 = arith.maximumf %56, %57 : vector<16x128xf32>
    %c3_i32 = arith.constant 3 : i32
    %59 = arith.index_cast %c3_i32 : i32 to index
    %c0_33 = arith.constant 0 : index
    %c0_34 = arith.constant 0 : index
    %60 = vector.load %arg2[%59, %c0_33, %c0_34] : memref<8x16x32xbf16, #tpu.memory_space<vmem>>, vector<1x16x32xbf16>
    %61 = vector.shape_cast %60 : vector<1x16x32xbf16> to vector<16x32xbf16>
    %cst_35 = arith.constant dense<0.000000e+00> : vector<16x128xf32>
    %62 = tpu.matmul %61, %3, %cst_35 {dimension_numbers = #tpu.dot_dimension_numbers<[1], [0], [0], [1], [0, 0, 1, 1], [], []>} : vector<16x32xbf16>, vector<32x128xbf16>, vector<16x128xf32> -> vector<16x128xf32>
    %63 = arith.truncf %51 : vector<16x128xf32> to vector<16x128xbf16>
    %cst_36 = arith.constant dense<0.000000e+00> : vector<16x128xf32>
    %64 = tpu.matmul %63, %4, %cst_36 {dimension_numbers = #tpu.dot_dimension_numbers<[1], [0], [0], [1], [0, 0, 1, 1], [], []>} : vector<16x128xbf16>, vector<128x128xbf16>, vector<16x128xf32> -> vector<16x128xf32>
    %65 = arith.addf %64, %62 : vector<16x128xf32>
    %cst_37 = arith.constant 0.000000e+00 : f32
    %66 = vector.broadcast %cst_37 : f32 to vector<16x128xf32>
    %67 = arith.maximumf %65, %66 : vector<16x128xf32>
    %68 = arith.truncf %67 : vector<16x128xf32> to vector<16x128xbf16>
    %69 = arith.truncf %58 : vector<16x128xf32> to vector<16x128xbf16>
    %70 = tpu.concatenate %68, %69 in 1 : vector<16x128xbf16>, vector<16x128xbf16> -> vector<16x256xbf16>
    %cst_38 = arith.constant dense<0.000000e+00> : vector<16x128xf32>
    %71 = tpu.matmul %70, %5, %cst_38 {dimension_numbers = #tpu.dot_dimension_numbers<[1], [0], [0], [1], [0, 0, 1, 1], [], []>} : vector<16x256xbf16>, vector<256x128xbf16>, vector<16x128xf32> -> vector<16x128xf32>
    %72 = arith.addf %71, %8 : vector<16x128xf32>
    %cst_39 = arith.constant 0.000000e+00 : f32
    %73 = vector.broadcast %cst_39 : f32 to vector<16x128xf32>
    %74 = arith.maximumf %72, %73 : vector<16x128xf32>
    %c4_i32 = arith.constant 4 : i32
    %75 = arith.index_cast %c4_i32 : i32 to index
    %c0_40 = arith.constant 0 : index
    %c0_41 = arith.constant 0 : index
    %76 = vector.load %arg2[%75, %c0_40, %c0_41] : memref<8x16x32xbf16, #tpu.memory_space<vmem>>, vector<1x16x32xbf16>
    %77 = vector.shape_cast %76 : vector<1x16x32xbf16> to vector<16x32xbf16>
    %cst_42 = arith.constant dense<0.000000e+00> : vector<16x128xf32>
    %78 = tpu.matmul %77, %3, %cst_42 {dimension_numbers = #tpu.dot_dimension_numbers<[1], [0], [0], [1], [0, 0, 1, 1], [], []>} : vector<16x32xbf16>, vector<32x128xbf16>, vector<16x128xf32> -> vector<16x128xf32>
    %79 = arith.truncf %67 : vector<16x128xf32> to vector<16x128xbf16>
    %cst_43 = arith.constant dense<0.000000e+00> : vector<16x128xf32>
    %80 = tpu.matmul %79, %4, %cst_43 {dimension_numbers = #tpu.dot_dimension_numbers<[1], [0], [0], [1], [0, 0, 1, 1], [], []>} : vector<16x128xbf16>, vector<128x128xbf16>, vector<16x128xf32> -> vector<16x128xf32>
    %81 = arith.addf %80, %78 : vector<16x128xf32>
    %cst_44 = arith.constant 0.000000e+00 : f32
    %82 = vector.broadcast %cst_44 : f32 to vector<16x128xf32>
    %83 = arith.maximumf %81, %82 : vector<16x128xf32>
    %84 = arith.truncf %83 : vector<16x128xf32> to vector<16x128xbf16>
    %85 = arith.truncf %74 : vector<16x128xf32> to vector<16x128xbf16>
    %86 = tpu.concatenate %84, %85 in 1 : vector<16x128xbf16>, vector<16x128xbf16> -> vector<16x256xbf16>
    %cst_45 = arith.constant dense<0.000000e+00> : vector<16x128xf32>
    %87 = tpu.matmul %86, %5, %cst_45 {dimension_numbers = #tpu.dot_dimension_numbers<[1], [0], [0], [1], [0, 0, 1, 1], [], []>} : vector<16x256xbf16>, vector<256x128xbf16>, vector<16x128xf32> -> vector<16x128xf32>
    %88 = arith.addf %87, %8 : vector<16x128xf32>
    %cst_46 = arith.constant 0.000000e+00 : f32
    %89 = vector.broadcast %cst_46 : f32 to vector<16x128xf32>
    %90 = arith.maximumf %88, %89 : vector<16x128xf32>
    %c5_i32 = arith.constant 5 : i32
    %91 = arith.index_cast %c5_i32 : i32 to index
    %c0_47 = arith.constant 0 : index
    %c0_48 = arith.constant 0 : index
    %92 = vector.load %arg2[%91, %c0_47, %c0_48] : memref<8x16x32xbf16, #tpu.memory_space<vmem>>, vector<1x16x32xbf16>
    %93 = vector.shape_cast %92 : vector<1x16x32xbf16> to vector<16x32xbf16>
    %cst_49 = arith.constant dense<0.000000e+00> : vector<16x128xf32>
    %94 = tpu.matmul %93, %3, %cst_49 {dimension_numbers = #tpu.dot_dimension_numbers<[1], [0], [0], [1], [0, 0, 1, 1], [], []>} : vector<16x32xbf16>, vector<32x128xbf16>, vector<16x128xf32> -> vector<16x128xf32>
    %95 = arith.truncf %83 : vector<16x128xf32> to vector<16x128xbf16>
    %cst_50 = arith.constant dense<0.000000e+00> : vector<16x128xf32>
    %96 = tpu.matmul %95, %4, %cst_50 {dimension_numbers = #tpu.dot_dimension_numbers<[1], [0], [0], [1], [0, 0, 1, 1], [], []>} : vector<16x128xbf16>, vector<128x128xbf16>, vector<16x128xf32> -> vector<16x128xf32>
    %97 = arith.addf %96, %94 : vector<16x128xf32>
    %cst_51 = arith.constant 0.000000e+00 : f32
    %98 = vector.broadcast %cst_51 : f32 to vector<16x128xf32>
    %99 = arith.maximumf %97, %98 : vector<16x128xf32>
    %100 = arith.truncf %99 : vector<16x128xf32> to vector<16x128xbf16>
    %101 = arith.truncf %90 : vector<16x128xf32> to vector<16x128xbf16>
    %102 = tpu.concatenate %100, %101 in 1 : vector<16x128xbf16>, vector<16x128xbf16> -> vector<16x256xbf16>
    %cst_52 = arith.constant dense<0.000000e+00> : vector<16x128xf32>
    %103 = tpu.matmul %102, %5, %cst_52 {dimension_numbers = #tpu.dot_dimension_numbers<[1], [0], [0], [1], [0, 0, 1, 1], [], []>} : vector<16x256xbf16>, vector<256x128xbf16>, vector<16x128xf32> -> vector<16x128xf32>
    %104 = arith.addf %103, %8 : vector<16x128xf32>
    %cst_53 = arith.constant 0.000000e+00 : f32
    %105 = vector.broadcast %cst_53 : f32 to vector<16x128xf32>
    %106 = arith.maximumf %104, %105 : vector<16x128xf32>
    %c6_i32 = arith.constant 6 : i32
    %107 = arith.index_cast %c6_i32 : i32 to index
    %c0_54 = arith.constant 0 : index
    %c0_55 = arith.constant 0 : index
    %108 = vector.load %arg2[%107, %c0_54, %c0_55] : memref<8x16x32xbf16, #tpu.memory_space<vmem>>, vector<1x16x32xbf16>
    %109 = vector.shape_cast %108 : vector<1x16x32xbf16> to vector<16x32xbf16>
    %cst_56 = arith.constant dense<0.000000e+00> : vector<16x128xf32>
    %110 = tpu.matmul %109, %3, %cst_56 {dimension_numbers = #tpu.dot_dimension_numbers<[1], [0], [0], [1], [0, 0, 1, 1], [], []>} : vector<16x32xbf16>, vector<32x128xbf16>, vector<16x128xf32> -> vector<16x128xf32>
    %111 = arith.truncf %99 : vector<16x128xf32> to vector<16x128xbf16>
    %cst_57 = arith.constant dense<0.000000e+00> : vector<16x128xf32>
    %112 = tpu.matmul %111, %4, %cst_57 {dimension_numbers = #tpu.dot_dimension_numbers<[1], [0], [0], [1], [0, 0, 1, 1], [], []>} : vector<16x128xbf16>, vector<128x128xbf16>, vector<16x128xf32> -> vector<16x128xf32>
    %113 = arith.addf %112, %110 : vector<16x128xf32>
    %cst_58 = arith.constant 0.000000e+00 : f32
    %114 = vector.broadcast %cst_58 : f32 to vector<16x128xf32>
    %115 = arith.maximumf %113, %114 : vector<16x128xf32>
    %116 = arith.truncf %115 : vector<16x128xf32> to vector<16x128xbf16>
    %117 = arith.truncf %106 : vector<16x128xf32> to vector<16x128xbf16>
    %118 = tpu.concatenate %116, %117 in 1 : vector<16x128xbf16>, vector<16x128xbf16> -> vector<16x256xbf16>
    %cst_59 = arith.constant dense<0.000000e+00> : vector<16x128xf32>
    %119 = tpu.matmul %118, %5, %cst_59 {dimension_numbers = #tpu.dot_dimension_numbers<[1], [0], [0], [1], [0, 0, 1, 1], [], []>} : vector<16x256xbf16>, vector<256x128xbf16>, vector<16x128xf32> -> vector<16x128xf32>
    %120 = arith.addf %119, %8 : vector<16x128xf32>
    %cst_60 = arith.constant 0.000000e+00 : f32
    %121 = vector.broadcast %cst_60 : f32 to vector<16x128xf32>
    %122 = arith.maximumf %120, %121 : vector<16x128xf32>
    %c7_i32 = arith.constant 7 : i32
    %123 = arith.index_cast %c7_i32 : i32 to index
    %c0_61 = arith.constant 0 : index
    %c0_62 = arith.constant 0 : index
    %124 = vector.load %arg2[%123, %c0_61, %c0_62] : memref<8x16x32xbf16, #tpu.memory_space<vmem>>, vector<1x16x32xbf16>
    %125 = vector.shape_cast %124 : vector<1x16x32xbf16> to vector<16x32xbf16>
    %cst_63 = arith.constant dense<0.000000e+00> : vector<16x128xf32>
    %126 = tpu.matmul %125, %3, %cst_63 {dimension_numbers = #tpu.dot_dimension_numbers<[1], [0], [0], [1], [0, 0, 1, 1], [], []>} : vector<16x32xbf16>, vector<32x128xbf16>, vector<16x128xf32> -> vector<16x128xf32>
    %127 = arith.truncf %115 : vector<16x128xf32> to vector<16x128xbf16>
    %cst_64 = arith.constant dense<0.000000e+00> : vector<16x128xf32>
    %128 = tpu.matmul %127, %4, %cst_64 {dimension_numbers = #tpu.dot_dimension_numbers<[1], [0], [0], [1], [0, 0, 1, 1], [], []>} : vector<16x128xbf16>, vector<128x128xbf16>, vector<16x128xf32> -> vector<16x128xf32>
    %129 = arith.addf %128, %126 : vector<16x128xf32>
    %cst_65 = arith.constant 0.000000e+00 : f32
    %130 = vector.broadcast %cst_65 : f32 to vector<16x128xf32>
    %131 = arith.maximumf %129, %130 : vector<16x128xf32>
    %132 = arith.truncf %131 : vector<16x128xf32> to vector<16x128xbf16>
    %133 = arith.truncf %122 : vector<16x128xf32> to vector<16x128xbf16>
    %134 = tpu.concatenate %132, %133 in 1 : vector<16x128xbf16>, vector<16x128xbf16> -> vector<16x256xbf16>
    %cst_66 = arith.constant dense<0.000000e+00> : vector<16x128xf32>
    %135 = tpu.matmul %134, %5, %cst_66 {dimension_numbers = #tpu.dot_dimension_numbers<[1], [0], [0], [1], [0, 0, 1, 1], [], []>} : vector<16x256xbf16>, vector<256x128xbf16>, vector<16x128xf32> -> vector<16x128xf32>
    %136 = arith.addf %135, %8 : vector<16x128xf32>
    %cst_67 = arith.constant 0.000000e+00 : f32
    %137 = vector.broadcast %cst_67 : f32 to vector<16x128xf32>
    %138 = arith.maximumf %136, %137 : vector<16x128xf32>
    %c8_i32 = arith.constant 8 : i32
    %c0_68 = arith.constant 0 : index
    %c0_69 = arith.constant 0 : index
    %139 = vector.load %arg14[%c0_68, %c0_69] : memref<16x128xf32, #tpu.memory_space<vmem>>, vector<16x128xf32>
    tpu.vector_store %arg14[%c0_68, %c0_69], %131 {strides = array<i32>} : memref<16x128xf32, #tpu.memory_space<vmem>>, vector<16x128xf32>,
    %c0_70 = arith.constant 0 : index
    %c0_71 = arith.constant 0 : index
    %140 = vector.load %arg15[%c0_70, %c0_71] : memref<16x128xf32, #tpu.memory_space<vmem>>, vector<16x128xf32>
    tpu.vector_store %arg15[%c0_70, %c0_71], %138 {strides = array<i32>} : memref<16x128xf32, #tpu.memory_space<vmem>>, vector<16x128xf32>,
    %c0_i32_72 = arith.constant 0 : i32
    %141 = arith.cmpi eq, %arg1, %c0_i32_72 : i32
    %142 = arith.extui %141 : i1 to i32
    %c0_i32_73 = arith.constant 0 : i32
    %143 = arith.cmpi ne, %142, %c0_i32_73 : i32
    scf.if %143 {
      %cst_74 = arith.constant dense<0.000000e+00> : vector<16xf32>
      %144 = vector.multi_reduction <add>, %138, %cst_74 [1] : vector<16x128xf32> to vector<16xf32>
      %145 = vector.shape_cast %144 : vector<16xf32> to vector<16x1xf32>
      %cst_75 = arith.constant 1.280000e+02 : f32
      %146 = vector.broadcast %cst_75 : f32 to vector<16x1xf32>
      %147 = arith.divf %145, %146 : vector<16x1xf32>
      %148 = vector.broadcast %147 : vector<16x1xf32> to vector<16x128xf32>
      %149 = arith.subf %138, %148 : vector<16x128xf32>
      %150 = arith.mulf %149, %149 : vector<16x128xf32>
      %cst_76 = arith.constant dense<0.000000e+00> : vector<16xf32>
      %151 = vector.multi_reduction <add>, %150, %cst_76 [1] : vector<16x128xf32> to vector<16xf32>
      %152 = vector.shape_cast %151 : vector<16xf32> to vector<16x1xf32>
      %cst_77 = arith.constant 1.280000e+02 : f32
      %153 = vector.broadcast %cst_77 : f32 to vector<16x1xf32>
      %154 = arith.divf %152, %153 : vector<16x1xf32>
      %155 = vector.broadcast %147 : vector<16x1xf32> to vector<16x128xf32>
      %156 = arith.subf %138, %155 : vector<16x128xf32>
      %cst_78 = arith.constant 9.99999974E-6 : f32
      %157 = vector.broadcast %cst_78 : f32 to vector<16x1xf32>
      %158 = arith.addf %154, %157 : vector<16x1xf32>
      %159 = math.rsqrt %158 : vector<16x1xf32>
      %160 = vector.broadcast %159 : vector<16x1xf32> to vector<16x128xf32>
      %161 = arith.mulf %156, %160 : vector<16x128xf32>
      %c0_79 = arith.constant 0 : index
      %c0_80 = arith.constant 0 : index
      %162 = vector.load %arg7[%c0_79, %c0_80] : memref<1x128xf32, #tpu.memory_space<vmem>>, vector<1x128xf32>
      %163 = vector.broadcast %162 : vector<1x128xf32> to vector<16x128xf32>
      %164 = arith.mulf %161, %163 : vector<16x128xf32>
      %c0_81 = arith.constant 0 : index
      %c0_82 = arith.constant 0 : index
      %165 = vector.load %arg8[%c0_81, %c0_82] : memref<1x128xf32, #tpu.memory_space<vmem>>, vector<1x128xf32>
      %166 = vector.broadcast %165 : vector<1x128xf32> to vector<16x128xf32>
      %167 = arith.addf %164, %166 : vector<16x128xf32>
      %168 = arith.truncf %167 : vector<16x128xf32> to vector<16x128xbf16>
      %c0_83 = arith.constant 0 : index
      %c0_84 = arith.constant 0 : index
      %169 = vector.load %arg9[%c0_83, %c0_84] : memref<128x128xbf16, #tpu.memory_space<vmem>>, vector<128x128xbf16>
      %cst_85 = arith.constant dense<0.000000e+00> : vector<16x128xf32>
      %170 = tpu.matmul %168, %169, %cst_85 {dimension_numbers = #tpu.dot_dimension_numbers<[1], [0], [0], [1], [0, 0, 1, 1], [], []>} : vector<16x128xbf16>, vector<128x128xbf16>, vector<16x128xf32> -> vector<16x128xf32>
      %c0_86 = arith.constant 0 : index
      %c0_87 = arith.constant 0 : index
      %171 = vector.load %arg10[%c0_86, %c0_87] : memref<1x128xf32, #tpu.memory_space<vmem>>, vector<1x128xf32>
      %172 = vector.broadcast %171 : vector<1x128xf32> to vector<16x128xf32>
      %173 = arith.addf %170, %172 : vector<16x128xf32>
      %cst_88 = arith.constant 0.000000e+00 : f32
      %174 = vector.broadcast %cst_88 : f32 to vector<16x128xf32>
      %175 = arith.maximumf %173, %174 : vector<16x128xf32>
      %176 = arith.truncf %175 : vector<16x128xf32> to vector<16x128xbf16>
      %c0_89 = arith.constant 0 : index
      %c0_90 = arith.constant 0 : index
      %177 = vector.load %arg11[%c0_89, %c0_90] : memref<128x128xbf16, #tpu.memory_space<vmem>>, vector<128x128xbf16>
      %cst_91 = arith.constant dense<0.000000e+00> : vector<16x128xf32>
      %178 = tpu.matmul %176, %177, %cst_91 {dimension_numbers = #tpu.dot_dimension_numbers<[1], [0], [0], [1], [0, 0, 1, 1], [], []>} : vector<16x128xbf16>, vector<128x128xbf16>, vector<16x128xf32> -> vector<16x128xf32>
      %c0_92 = arith.constant 0 : index
      %c0_93 = arith.constant 0 : index
      %179 = vector.load %arg12[%c0_92, %c0_93] : memref<1x128xf32, #tpu.memory_space<vmem>>, vector<1x128xf32>
      %180 = vector.broadcast %179 : vector<1x128xf32> to vector<16x128xf32>
      %181 = arith.addf %178, %180 : vector<16x128xf32>
      %c0_94 = arith.constant 0 : index
      %c0_95 = arith.constant 0 : index
      %182 = vector.load %arg13[%c0_94, %c0_95] : memref<16x128xf32, #tpu.memory_space<vmem>>, vector<16x128xf32>
      tpu.vector_store %arg13[%c0_94, %c0_95], %181 {strides = array<i32>} : memref<16x128xf32, #tpu.memory_space<vmem>>, vector<16x128xf32>,
    } else {
    }
    return
  }
  func.func @transform_0(%arg0: i32, %arg1: i32) -> (i32, i32, i32) {
    %c0_i32 = arith.constant 0 : i32
    %c0_i32_0 = arith.constant 0 : i32
    return %arg1, %arg0, %c0_i32 : i32, i32, i32
  }
  func.func @transform_1(%arg0: i32, %arg1: i32) -> (i32, i32) {
    %c0_i32 = arith.constant 0 : i32
    %c0_i32_0 = arith.constant 0 : i32
    %c0_i32_1 = arith.constant 0 : i32
    return %c0_i32, %c0_i32_0 : i32, i32
  }
  func.func @transform_2(%arg0: i32, %arg1: i32) -> (i32, i32) {
    %c0_i32 = arith.constant 0 : i32
    %c0_i32_0 = arith.constant 0 : i32
    %c0_i32_1 = arith.constant 0 : i32
    return %c0_i32, %c0_i32_0 : i32, i32
  }
  func.func @transform_3(%arg0: i32, %arg1: i32) -> (i32, i32) {
    %c0_i32 = arith.constant 0 : i32
    %c0_i32_0 = arith.constant 0 : i32
    %c0_i32_1 = arith.constant 0 : i32
    return %c0_i32, %c0_i32_0 : i32, i32
  }
  func.func @transform_4(%arg0: i32, %arg1: i32) -> (i32, i32) {
    %c0_i32 = arith.constant 0 : i32
    %c0_i32_0 = arith.constant 0 : i32
    %c0_i32_1 = arith.constant 0 : i32
    return %c0_i32, %c0_i32_0 : i32, i32
  }
  func.func @transform_5(%arg0: i32, %arg1: i32) -> (i32, i32) {
    %c0_i32 = arith.constant 0 : i32
    %c0_i32_0 = arith.constant 0 : i32
    %c0_i32_1 = arith.constant 0 : i32
    return %c0_i32, %c0_i32_0 : i32, i32
  }
  func.func @transform_6(%arg0: i32, %arg1: i32) -> (i32, i32) {
    %c0_i32 = arith.constant 0 : i32
    %c0_i32_0 = arith.constant 0 : i32
    %c0_i32_1 = arith.constant 0 : i32
    return %c0_i32, %c0_i32_0 : i32, i32
  }
  func.func @transform_7(%arg0: i32, %arg1: i32) -> (i32, i32) {
    %c0_i32 = arith.constant 0 : i32
    %c0_i32_0 = arith.constant 0 : i32
    %c0_i32_1 = arith.constant 0 : i32
    return %c0_i32, %c0_i32_0 : i32, i32
  }
  func.func @transform_8(%arg0: i32, %arg1: i32) -> (i32, i32) {
    %c0_i32 = arith.constant 0 : i32
    %c0_i32_0 = arith.constant 0 : i32
    %c0_i32_1 = arith.constant 0 : i32
    return %c0_i32, %c0_i32_0 : i32, i32
  }
  func.func @transform_9(%arg0: i32, %arg1: i32) -> (i32, i32) {
    %c0_i32 = arith.constant 0 : i32
    %c0_i32_0 = arith.constant 0 : i32
    %c0_i32_1 = arith.constant 0 : i32
    return %c0_i32, %c0_i32_0 : i32, i32
  }
  func.func @transform_10(%arg0: i32, %arg1: i32) -> (i32, i32) {
    %c0_i32 = arith.constant 0 : i32
    %c0_i32_0 = arith.constant 0 : i32
    %c0_i32_1 = arith.constant 0 : i32
    return %c0_i32, %c0_i32_0 : i32, i32
  }
  func.func @transform_11(%arg0: i32, %arg1: i32) -> (i32, i32) {
    %c0_i32 = arith.constant 0 : i32
    %c0_i32_0 = arith.constant 0 : i32
    return %arg0, %c0_i32 : i32, i32
  }
}

</mosaic_0001>

<llo_original>
// kernel: tpu_custom_call.1
$region0: #{tpu_custom_call.1}
  #allocation0 [shape = 'u32[]', space=smem, size = 0x4, offset = 0x4, fixed_abs, tag = 'smem constant byte address 0x4 - core index']
  #allocation1 [shape = 'u32[72,128]{1,0:T(1,128)}', space=vmem, size = 0x9000, scoped, tag = 'internal scratch']
  #allocation2 [shape = 'f32[16,128]{1,0:T(8,128)}', space=vmem, size = 0x2000, scoped, tag = 'scratch operand']
  #allocation3 [shape = 'f32[16,128]{1,0:T(8,128)}', space=vmem, size = 0x2000, scoped, tag = 'scratch operand']
  %s0 = inlined_call_operand.hbm [shape: bf16[8,16,32], index: 0, kind: input, shape index: {}]
  %s1 = inlined_call_operand.hbm [shape: bf16[32,128], index: 1, kind: input, shape index: {}]
  %s2 = inlined_call_operand.hbm [shape: bf16[128,128], index: 2, kind: input, shape index: {}]
  %s3 = inlined_call_operand.hbm [shape: bf16[256,128], index: 3, kind: input, shape index: {}]
  %s4 = inlined_call_operand.vmem [shape: f32[1,128], index: 4, kind: input, shape index: {}]
  %s5 = inlined_call_operand.vmem [shape: f32[1,128], index: 5, kind: input, shape index: {}]
  %s6 = inlined_call_operand.vmem [shape: f32[1,128], index: 6, kind: input, shape index: {}]
  %s7 = inlined_call_operand.hbm [shape: bf16[128,128], index: 7, kind: input, shape index: {}]
  %s8 = inlined_call_operand.vmem [shape: f32[1,128], index: 8, kind: input, shape index: {}]
  %s9 = inlined_call_operand.hbm [shape: bf16[128,128], index: 9, kind: input, shape index: {}]
  %s10 = inlined_call_operand.vmem [shape: f32[1,128], index: 10, kind: input, shape index: {}]
  %s11 = inlined_call_operand.hbm [shape: f32[16,128], index: 11, kind: output, shape index: {}]
  %s12 = sld [smem:[#allocation0]]
  $region86: #{tpu_custom_call.1} parent=0
    _
  %s14 = ssub.s32 1, %s12
  %s15 = scalar_select 0, %s14, %s12
  $region1: #{tpu_custom_call.1} parent=0
    #allocation4 [shape = 'u8[32768]{0}', space=vmem, size = 0x8000, scoped, tag = 'input window, operand 0, single buffered']
    #allocation5 [shape = 's32[1]{0}', space=sflag, size = 0x4, scoped, tag = 'scoped memory for tpu_custom_call.1']
    #allocation6 [shape = 's32[1]{0}', space=sflag, size = 0x4, scoped, tag = 'scoped memory for tpu_custom_call.1']
    #allocation7 [shape = 'u8[8192]{0}', space=vmem, size = 0x2000, scoped, tag = 'input window, operand 1, single buffered']
    #allocation8 [shape = 's32[1]{0}', space=sflag, size = 0x4, scoped, tag = 'scoped memory for tpu_custom_call.1']
    #allocation9 [shape = 'u8[32768]{0}', space=vmem, size = 0x8000, scoped, tag = 'input window, operand 2, single buffered']
    #allocation10 [shape = 'u8[65536]{0}', space=vmem, size = 0x10000, scoped, tag = 'input window, operand 3, single buffered']
    #allocation11 [shape = 's32[1]{0}', space=sflag, size = 0x4, scoped, tag = 'scoped memory for tpu_custom_call.1']
    #allocation12 [shape = 'u8[32768]{0}', space=vmem, size = 0x8000, scoped, tag = 'input window, operand 7, single buffered']
    #allocation13 [shape = 'u8[32768]{0}', space=vmem, size = 0x8000, scoped, tag = 'input window, operand 9, single buffered']
    #allocation14 [shape = 's32[1]{0}', space=sflag, size = 0x4, scoped, tag = 'scoped memory for tpu_custom_call.1']
    #allocation15 [shape = 'u8[8192]{0}', space=vmem, size = 0x2000, scoped, tag = 'output window, operand 0, single buffered']
    %16 = vsyncpa [#allocation5], 0
    %17 = vsyncpa [#allocation8], 0
    %18 = vsyncpa [#allocation11], 0
    %19 = vsyncpa [#allocation14], 0
    %20 = vsyncpa [#allocation6], 0
    // Predicated region
    $region2: #{tpu_custom_call.1} parent=1 // pred_check
      _
    $region3: #{tpu_custom_call.1} parent=1 // pred_check_branch
      %22 = sbr.rel (0) target = $region5
    $region4: #{tpu_custom_call.1} parent=1 // pred_region
      %24 = vsyncadd [#allocation5], 0
      %s25 = sshll.u32 %s0, 4
      %s26 = int_to_ptr.hbm [resolvable:$true] %s25
      %s27 = sshll.u32 [#allocation4], 4
      %s28 = int_to_ptr.vmem [resolvable:$true] %s27
      %33 = dma.hbm_to_vmem [thread:$0]  %s26, 1024, %s28, [#allocation5], 64, 64, 4
    $region5: #{tpu_custom_call.1} parent=1 // pred_fallthru
      _
    // Predicated region
    $region6: #{tpu_custom_call.1} parent=1 // pred_check
      _
    $region7: #{tpu_custom_call.1} parent=1 // pred_check_branch
      %35 = sbr.rel (0) target = $region9
    $region8: #{tpu_custom_call.1} parent=1 // pred_region
      %37 = vsyncadd [#allocation8], 0
      %s38 = sshll.u32 %s1, 4
      %s39 = int_to_ptr.hbm [resolvable:$true] %s38
      %s40 = sshll.u32 [#allocation7], 4
      %s41 = int_to_ptr.vmem [resolvable:$true] %s40
      %46 = dma.hbm_to_vmem [thread:$0]  %s39, 256, %s41, [#allocation8], 64, 64, 4
    $region9: #{tpu_custom_call.1} parent=1 // pred_fallthru
      _
    // Predicated region
    $region10: #{tpu_custom_call.1} parent=1 // pred_check
      _
    $region11: #{tpu_custom_call.1} parent=1 // pred_check_branch
      %48 = sbr.rel (0) target = $region13
    $region12: #{tpu_custom_call.1} parent=1 // pred_region
      %50 = vsyncadd [#allocation8], 0
      %s51 = sshll.u32 %s2, 4
      %s52 = int_to_ptr.hbm [resolvable:$true] %s51
      %s53 = sshll.u32 [#allocation9], 4
      %s54 = int_to_ptr.vmem [resolvable:$true] %s53
      %59 = dma.hbm_to_vmem [thread:$0]  %s52, 1024, %s54, [#allocation8], 64, 64, 4
    $region13: #{tpu_custom_call.1} parent=1 // pred_fallthru
      _
    // Predicated region
    $region14: #{tpu_custom_call.1} parent=1 // pred_check
      _
    $region15: #{tpu_custom_call.1} parent=1 // pred_check_branch
      %61 = sbr.rel (0) target = $region17
    $region16: #{tpu_custom_call.1} parent=1 // pred_region
      %63 = vsyncadd [#allocation11], 0
      %s64 = sshll.u32 %s3, 4
      %s65 = int_to_ptr.hbm [resolvable:$true] %s64
      %s66 = sshll.u32 [#allocation10], 4
      %s67 = int_to_ptr.vmem [resolvable:$true] %s66
      %72 = dma.hbm_to_vmem [thread:$0]  %s65, 2048, %s67, [#allocation11], 64, 64, 4
    $region17: #{tpu_custom_call.1} parent=1 // pred_fallthru
      _
    // Predicated region
    $region18: #{tpu_custom_call.1} parent=1 // pred_check
      _
    $region19: #{tpu_custom_call.1} parent=1 // pred_check_branch
      %74 = sbr.rel (0) target = $region21
    $region20: #{tpu_custom_call.1} parent=1 // pred_region
      _
    $region21: #{tpu_custom_call.1} parent=1 // pred_fallthru
      _
    // Predicated region
    $region22: #{tpu_custom_call.1} parent=1 // pred_check
      _
    $region23: #{tpu_custom_call.1} parent=1 // pred_check_branch
      %76 = sbr.rel (0) target = $region25
    $region24: #{tpu_custom_call.1} parent=1 // pred_region
      _
    $region25: #{tpu_custom_call.1} parent=1 // pred_fallthru
      _
    // Predicated region
    $region26: #{tpu_custom_call.1} parent=1 // pred_check
      _
    $region27: #{tpu_custom_call.1} parent=1 // pred_check_branch
      %78 = sbr.rel (0) target = $region29
    $region28: #{tpu_custom_call.1} parent=1 // pred_region
      _
    $region29: #{tpu_custom_call.1} parent=1 // pred_fallthru
      _
    // Predicated region
    $region30: #{tpu_custom_call.1} parent=1 // pred_check
      _
    $region31: #{tpu_custom_call.1} parent=1 // pred_check_branch
      %80 = sbr.rel (0) target = $region33
    $region32: #{tpu_custom_call.1} parent=1 // pred_region
      %82 = vsyncadd [#allocation11], 0
      %s83 = sshll.u32 %s7, 4
      %s84 = int_to_ptr.hbm [resolvable:$true] %s83
      %s85 = sshll.u32 [#allocation12], 4
      %s86 = int_to_ptr.vmem [resolvable:$true] %s85
      %91 = dma.hbm_to_vmem [thread:$0]  %s84, 1024, %s86, [#allocation11], 64, 64, 4
    $region33: #{tpu_custom_call.1} parent=1 // pred_fallthru
      _
    // Predicated region
    $region34: #{tpu_custom_call.1} parent=1 // pred_check
      _
    $region35: #{tpu_custom_call.1} parent=1 // pred_check_branch
      %93 = sbr.rel (0) target = $region37
    $region36: #{tpu_custom_call.1} parent=1 // pred_region
      _
    $region37: #{tpu_custom_call.1} parent=1 // pred_fallthru
      _
    // Predicated region
    $region38: #{tpu_custom_call.1} parent=1 // pred_check
      _
    $region39: #{tpu_custom_call.1} parent=1 // pred_check_branch
      %95 = sbr.rel (0) target = $region41
    $region40: #{tpu_custom_call.1} parent=1 // pred_region
      %97 = vsyncadd [#allocation14], 0
      %s98 = sshll.u32 %s9, 4
      %s99 = int_to_ptr.hbm [resolvable:$true] %s98
      %s100 = sshll.u32 [#allocation13], 4
      %s101 = int_to_ptr.vmem [resolvable:$true] %s100
      %106 = dma.hbm_to_vmem [thread:$0]  %s99, 1024, %s101, [#allocation14], 64, 64, 4
    $region41: #{tpu_custom_call.1} parent=1 // pred_fallthru
      _
    // Predicated region
    $region42: #{tpu_custom_call.1} parent=1 // pred_check
      _
    $region43: #{tpu_custom_call.1} parent=1 // pred_check_branch
      %108 = sbr.rel (0) target = $region45
    $region44: #{tpu_custom_call.1} parent=1 // pred_region
      _
    $region45: #{tpu_custom_call.1} parent=1 // pred_fallthru
      _
    // Predicated region
    $region46: #{tpu_custom_call.1} parent=1 // pred_check
      _
    $region47: #{tpu_custom_call.1} parent=1 // pred_check_branch
      %110 = sbr.rel (0) target = $region49
    $region48: #{tpu_custom_call.1} parent=1 // pred_region
      %112 = dma.done [#allocation5], 1024
    $region49: #{tpu_custom_call.1} parent=1 // pred_fallthru
      _
    // Predicated region
    $region50: #{tpu_custom_call.1} parent=1 // pred_check
      _
    $region51: #{tpu_custom_call.1} parent=1 // pred_check_branch
      %114 = sbr.rel (0) target = $region53
    $region52: #{tpu_custom_call.1} parent=1 // pred_region
      %116 = dma.done [#allocation8], 256
    $region53: #{tpu_custom_call.1} parent=1 // pred_fallthru
      _
    // Predicated region
    $region54: #{tpu_custom_call.1} parent=1 // pred_check
      _
    $region55: #{tpu_custom_call.1} parent=1 // pred_check_branch
      %118 = sbr.rel (0) target = $region57
    $region56: #{tpu_custom_call.1} parent=1 // pred_region
      %120 = dma.done [#allocation8], 1024
    $region57: #{tpu_custom_call.1} parent=1 // pred_fallthru
      _
    // Predicated region
    $region58: #{tpu_custom_call.1} parent=1 // pred_check
      _
    $region59: #{tpu_custom_call.1} parent=1 // pred_check_branch
      %122 = sbr.rel (0) target = $region61
    $region60: #{tpu_custom_call.1} parent=1 // pred_region
      %124 = dma.done [#allocation11], 2048
    $region61: #{tpu_custom_call.1} parent=1 // pred_fallthru
      _
    // Predicated region
    $region62: #{tpu_custom_call.1} parent=1 // pred_check
      _
    $region63: #{tpu_custom_call.1} parent=1 // pred_check_branch
      %126 = sbr.rel (0) target = $region65
    $region64: #{tpu_custom_call.1} parent=1 // pred_region
      %128 = dma.done [#allocation11], 1024
    $region65: #{tpu_custom_call.1} parent=1 // pred_fallthru
      _
    // Predicated region
    $region66: #{tpu_custom_call.1} parent=1 // pred_check
      _
    $region67: #{tpu_custom_call.1} parent=1 // pred_check_branch
      %130 = sbr.rel (0) target = $region69
    $region68: #{tpu_custom_call.1} parent=1 // pred_region
      %132 = dma.done [#allocation14], 1024
    $region69: #{tpu_custom_call.1} parent=1 // pred_fallthru
      _
    %p134 = scmp.eq.s32.totalorder 0, 0
    // Predicated region
    $region70: #{tpu_custom_call.1} parent=1 // pred_check
      %p135 = pneg %p134
    $region71: #{tpu_custom_call.1} parent=1 // pred_check_branch
      %137 = sbr.rel (%p135) target = $region73
    $region72: #{tpu_custom_call.1} parent=1 // pred_region
      %138 = vst [vmem:[#allocation2] sm:$0xff] 0.0
      %139 = vst [vmem:[#allocation2 + $0x8] sm:$0xff] 0.0
      %140 = vst [vmem:[#allocation3] sm:$0xff] 0.0
      %141 = vst [vmem:[#allocation3 + $0x8] sm:$0xff] 0.0
    $region73: #{tpu_custom_call.1} parent=1 // pred_fallthru
      _
    %v142 = vld [vmem:[#allocation7] sm:$0xf]
    %v143 = vld [vmem:[#allocation7 + $0x4] sm:$0xf]
    %v144 = vld [vmem:[#allocation7 + $0x8] sm:$0xf]
    %v145 = vld [vmem:[#allocation7 + $0xc] sm:$0xf]
    %v146 = vld [vmem:[#allocation9] sm:$0xf]
    %v147 = vld [vmem:[#allocation9 + $0x4] sm:$0xf]
    %v148 = vld [vmem:[#allocation9 + $0x8] sm:$0xf]
    %v149 = vld [vmem:[#allocation9 + $0xc] sm:$0xf]
    %v150 = vld [vmem:[#allocation9 + $0x10] sm:$0xf]
    %v151 = vld [vmem:[#allocation9 + $0x14] sm:$0xf]
    %v152 = vld [vmem:[#allocation9 + $0x18] sm:$0xf]
    %v153 = vld [vmem:[#allocation9 + $0x1c] sm:$0xf]
    %v154 = vld [vmem:[#allocation9 + $0x20] sm:$0xf]
    %v155 = vld [vmem:[#allocation9 + $0x24] sm:$0xf]
    %v156 = vld [vmem:[#allocation9 + $0x28] sm:$0xf]
    %v157 = vld [vmem:[#allocation9 + $0x2c] sm:$0xf]
    %v158 = vld [vmem:[#allocation9 + $0x30] sm:$0xf]
    %v159 = vld [vmem:[#allocation9 + $0x34] sm:$0xf]
    %v160 = vld [vmem:[#allocation9 + $0x38] sm:$0xf]
    %v161 = vld [vmem:[#allocation9 + $0x3c] sm:$0xf]
    %v162 = vld [vmem:[#allocation10] sm:$0xf]
    %v163 = vld [vmem:[#allocation10 + $0x4] sm:$0xf]
    %v164 = vld [vmem:[#allocation10 + $0x8] sm:$0xf]
    %v165 = vld [vmem:[#allocation10 + $0xc] sm:$0xf]
    %v166 = vld [vmem:[#allocation10 + $0x10] sm:$0xf]
    %v167 = vld [vmem:[#allocation10 + $0x14] sm:$0xf]
    %v168 = vld [vmem:[#allocation10 + $0x18] sm:$0xf]
    %v169 = vld [vmem:[#allocation10 + $0x1c] sm:$0xf]
    %v170 = vld [vmem:[#allocation10 + $0x20] sm:$0xf]
    %v171 = vld [vmem:[#allocation10 + $0x24] sm:$0xf]
    %v172 = vld [vmem:[#allocation10 + $0x28] sm:$0xf]
    %v173 = vld [vmem:[#allocation10 + $0x2c] sm:$0xf]
    %v174 = vld [vmem:[#allocation10 + $0x30] sm:$0xf]
    %v175 = vld [vmem:[#allocation10 + $0x34] sm:$0xf]
    %v176 = vld [vmem:[#allocation10 + $0x38] sm:$0xf]
    %v177 = vld [vmem:[#allocation10 + $0x3c] sm:$0xf]
    %v178 = vld [vmem:[#allocation10 + $0x40] sm:$0xf]
    %v179 = vld [vmem:[#allocation10 + $0x44] sm:$0xf]
    %v180 = vld [vmem:[#allocation10 + $0x48] sm:$0xf]
    %v181 = vld [vmem:[#allocation10 + $0x4c] sm:$0xf]
    %v182 = vld [vmem:[#allocation10 + $0x50] sm:$0xf]
    %v183 = vld [vmem:[#allocation10 + $0x54] sm:$0xf]
    %v184 = vld [vmem:[#allocation10 + $0x58] sm:$0xf]
    %v185 = vld [vmem:[#allocation10 + $0x5c] sm:$0xf]
    %v186 = vld [vmem:[#allocation10 + $0x60] sm:$0xf]
    %v187 = vld [vmem:[#allocation10 + $0x64] sm:$0xf]
    %v188 = vld [vmem:[#allocation10 + $0x68] sm:$0xf]
    %v189 = vld [vmem:[#allocation10 + $0x6c] sm:$0xf]
    %v190 = vld [vmem:[#allocation10 + $0x70] sm:$0xf]
    %v191 = vld [vmem:[#allocation10 + $0x74] sm:$0xf]
    %v192 = vld [vmem:[#allocation10 + $0x78] sm:$0xf]
    %v193 = vld [vmem:[#allocation10 + $0x7c] sm:$0xf]
    %v194 = vld [vmem:[%s4] sm:$0x1]
    %v196 = vperm.slane %v194, 0
    %v198 = vld [vmem:[#allocation2] sm:$0xff]
    %v199 = vld [vmem:[#allocation2 + $0x8] sm:$0xff]
    %v200 = vld [vmem:[#allocation3] sm:$0xff]
    %v201 = vld [vmem:[#allocation3 + $0x8] sm:$0xff]
    %v202 = vld [vmem:[#allocation4] sm:$0xf]
    %v203 = vld [vmem:[#allocation4 + $0x4] sm:$0xf]
    %v206 = vunpack.c.l.b16 %v202
    %v207 = vunpack.c.l.b16 %v203
    %v208 = vpack.c.b16 %v207, %v206
    %v213 = vunpack.c.l.b16 %v142
    %v214 = vunpack.c.l.b16 %v143
    %v215 = vunpack.c.l.b16 %v144
    %v216 = vunpack.c.l.b16 %v145
    %v217 = vpack.c.b16 %v214, %v213
    %v218 = vpack.c.b16 %v216, %v215
    %vm221 = vcmask 261120
    %v223 = vsel %vm221, %v208, 0
    %225 = vmatpush.bf16.msra.mxu0 0
    %226 = vmatpush.bf16.msra.mxu0 0
    %227 = vmatpush.bf16.msra.mxu0 0
    %228 = vmatpush.bf16.msra.mxu0 0
    %229 = vmatpush.bf16.msra.mxu0 0
    %230 = vmatpush.bf16.msra.mxu0 0
    %231 = vmatpush.bf16.msra.mxu0 %v218
    %232 = vmatpush.bf16.msra.mxu0 %v217
    %233 = vmatmul.bf16.gmra.mxu0 %v223
    %v234 = vpop.f32.mrf.mxu0
    %v235 = vadd.f32 0.0, %v234
    %v236 = vpop.f32.mrf.mxu0
    %v237 = vadd.f32 0.0, %v236
    %238 = vdwg.mxu0
    %v239 = vpack.c.bf16 %v199, %v198
    %v256 = vunpack.c.l.b16 %v146
    %v257 = vunpack.c.l.b16 %v147
    %v258 = vunpack.c.l.b16 %v148
    %v259 = vunpack.c.l.b16 %v149
    %v260 = vunpack.c.l.b16 %v150
    %v261 = vunpack.c.l.b16 %v151
    %v262 = vunpack.c.l.b16 %v152
    %v263 = vunpack.c.l.b16 %v153
    %v264 = vunpack.c.l.b16 %v154
    %v265 = vunpack.c.l.b16 %v155
    %v266 = vunpack.c.l.b16 %v156
    %v267 = vunpack.c.l.b16 %v157
    %v268 = vunpack.c.l.b16 %v158
    %v269 = vunpack.c.l.b16 %v159
    %v270 = vunpack.c.l.b16 %v160
    %v271 = vunpack.c.l.b16 %v161
    %v272 = vpack.c.b16 %v257, %v256
    %v273 = vpack.c.b16 %v259, %v258
    %v274 = vpack.c.b16 %v261, %v260
    %v275 = vpack.c.b16 %v263, %v262
    %v276 = vpack.c.b16 %v265, %v264
    %v277 = vpack.c.b16 %v267, %v266
    %v278 = vpack.c.b16 %v269, %v268
    %v279 = vpack.c.b16 %v271, %v270
    %288 = vmatpush.bf16.msra.mxu0 %v279
    %289 = vmatpush.bf16.msra.mxu0 %v278
    %290 = vmatpush.bf16.msra.mxu0 %v277
    %291 = vmatpush.bf16.msra.mxu0 %v276
    %292 = vmatpush.bf16.msra.mxu0 %v275
    %293 = vmatpush.bf16.msra.mxu0 %v274
    %294 = vmatpush.bf16.msra.mxu0 %v273
    %295 = vmatpush.bf16.msra.mxu0 %v272
    %296 = vmatmul.bf16.gmra.mxu0 %v239
    %v297 = vpop.f32.mrf.mxu0
    %v298 = vadd.f32 %v235, %v297
    %v299 = vpop.f32.mrf.mxu0
    %v300 = vadd.f32 %v237, %v299
    %301 = vdwg.mxu0
    %v302 = vmax.f32 %v298, 0.0
    %v303 = vmax.f32 %v300, 0.0
    %v304 = vpack.c.bf16 %v302, %v302
    %v305 = vpack.c.bf16 %v303, %v303
    %v306 = vpack.c.bf16 %v200, %v200
    %v307 = vpack.c.bf16 %v201, %v201
    %v310 = vunpack.c.l.b16 %v304
    %v311 = vunpack.c.l.b16 %v305
    %v312 = vpack.c.b16 %v311, %v310
    %v316 = vunpack.c.l.b16 %v306
    %v317 = vunpack.c.l.b16 %v307
    %v318 = vpack.c.b16 %v317, %v316
    %v352 = vunpack.c.l.b16 %v162
    %v353 = vunpack.c.l.b16 %v163
    %v354 = vunpack.c.l.b16 %v164
    %v355 = vunpack.c.l.b16 %v165
    %v356 = vunpack.c.l.b16 %v166
    %v357 = vunpack.c.l.b16 %v167
    %v358 = vunpack.c.l.b16 %v168
    %v359 = vunpack.c.l.b16 %v169
    %v360 = vunpack.c.l.b16 %v170
    %v361 = vunpack.c.l.b16 %v171
    %v362 = vunpack.c.l.b16 %v172
    %v363 = vunpack.c.l.b16 %v173
    %v364 = vunpack.c.l.b16 %v174
    %v365 = vunpack.c.l.b16 %v175
    %v366 = vunpack.c.l.b16 %v176
    %v367 = vunpack.c.l.b16 %v177
    %v368 = vunpack.c.l.b16 %v178
    %v369 = vunpack.c.l.b16 %v179
    %v370 = vunpack.c.l.b16 %v180
    %v371 = vunpack.c.l.b16 %v181
    %v372 = vunpack.c.l.b16 %v182
    %v373 = vunpack.c.l.b16 %v183
    %v374 = vunpack.c.l.b16 %v184
    %v375 = vunpack.c.l.b16 %v185
    %v376 = vunpack.c.l.b16 %v186
    %v377 = vunpack.c.l.b16 %v187
    %v378 = vunpack.c.l.b16 %v188
    %v379 = vunpack.c.l.b16 %v189
    %v380 = vunpack.c.l.b16 %v190
    %v381 = vunpack.c.l.b16 %v191
    %v382 = vunpack.c.l.b16 %v192
    %v383 = vunpack.c.l.b16 %v193
    %v384 = vpack.c.b16 %v353, %v352
    %v385 = vpack.c.b16 %v355, %v354
    %v386 = vpack.c.b16 %v357, %v356
    %v387 = vpack.c.b16 %v359, %v358
    %v388 = vpack.c.b16 %v361, %v360
    %v389 = vpack.c.b16 %v363, %v362
    %v390 = vpack.c.b16 %v365, %v364
    %v391 = vpack.c.b16 %v367, %v366
    %v392 = vpack.c.b16 %v369, %v368
    %v393 = vpack.c.b16 %v371, %v370
    %v394 = vpack.c.b16 %v373, %v372
    %v395 = vpack.c.b16 %v375, %v374
    %v396 = vpack.c.b16 %v377, %v376
    %v397 = vpack.c.b16 %v379, %v378
    %v398 = vpack.c.b16 %v381, %v380
    %v399 = vpack.c.b16 %v383, %v382
    %416 = vmatpush.bf16.msra.mxu0 %v391
    %417 = vmatpush.bf16.msra.mxu0 %v390
    %418 = vmatpush.bf16.msra.mxu0 %v389
    %419 = vmatpush.bf16.msra.mxu0 %v388
    %420 = vmatpush.bf16.msra.mxu0 %v387
    %421 = vmatpush.bf16.msra.mxu0 %v386
    %422 = vmatpush.bf16.msra.mxu0 %v385
    %423 = vmatpush.bf16.msra.mxu0 %v384
    %424 = vmatmul.bf16.gmra.mxu0 %v312
    %v425 = vpop.f32.mrf.mxu0
    %v426 = vadd.f32 %v196, %v425
    %v427 = vpop.f32.mrf.mxu0
    %v428 = vadd.f32 %v196, %v427
    %429 = vdwg.mxu0
    %430 = vmatpush.bf16.msra.mxu0 %v399
    %431 = vmatpush.bf16.msra.mxu0 %v398
    %432 = vmatpush.bf16.msra.mxu0 %v397
    %433 = vmatpush.bf16.msra.mxu0 %v396
    %434 = vmatpush.bf16.msra.mxu0 %v395
    %435 = vmatpush.bf16.msra.mxu0 %v394
    %436 = vmatpush.bf16.msra.mxu0 %v393
    %437 = vmatpush.bf16.msra.mxu0 %v392
    %438 = vmatmul.bf16.gmra.mxu0 %v318
    %v439 = vpop.f32.mrf.mxu0
    %v440 = vadd.f32 %v426, %v439
    %v441 = vpop.f32.mrf.mxu0
    %v442 = vadd.f32 %v428, %v441
    %443 = vdwg.mxu0
    %v444 = vmax.f32 %v440, 0.0
    %v445 = vmax.f32 %v442, 0.0
    %s446 = scalar_lea.vmem [#allocation4], 8
    %v447 = vld [vmem:[%s446] sm:$0xf]
    %v448 = vld [vmem:[%s446 + $0x4] sm:$0xf]
    %v451 = vunpack.c.l.b16 %v447
    %v452 = vunpack.c.l.b16 %v448
    %v453 = vpack.c.b16 %v452, %v451
    %v455 = vsel %vm221, %v453, 0
    %457 = vmatpush.bf16.msra.mxu0 0
    %458 = vmatpush.bf16.msra.mxu0 0
    %459 = vmatpush.bf16.msra.mxu0 0
    %460 = vmatpush.bf16.msra.mxu0 0
    %461 = vmatpush.bf16.msra.mxu0 0
    %462 = vmatpush.bf16.msra.mxu0 0
    %463 = vmatpush.bf16.msra.mxu0 %v218
    %464 = vmatpush.bf16.msra.mxu0 %v217
    %465 = vmatmul.bf16.gmra.mxu0 %v455
    %v466 = vpop.f32.mrf.mxu0
    %v467 = vadd.f32 0.0, %v466
    %v468 = vpop.f32.mrf.mxu0
    %v469 = vadd.f32 0.0, %v468
    %470 = vdwg.mxu0
    %471 = vmatpush.bf16.msra.mxu0 %v279
    %472 = vmatpush.bf16.msra.mxu0 %v278
    %473 = vmatpush.bf16.msra.mxu0 %v277
    %474 = vmatpush.bf16.msra.mxu0 %v276
    %475 = vmatpush.bf16.msra.mxu0 %v275
    %476 = vmatpush.bf16.msra.mxu0 %v274
    %477 = vmatpush.bf16.msra.mxu0 %v273
    %478 = vmatpush.bf16.msra.mxu0 %v272
    %479 = vmatmul.bf16.gmra.mxu0 %v312
    %v480 = vpop.f32.mrf.mxu0
    %v481 = vadd.f32 %v467, %v480
    %v482 = vpop.f32.mrf.mxu0
    %v483 = vadd.f32 %v469, %v482
    %484 = vdwg.mxu0
    %v485 = vmax.f32 %v481, 0.0
    %v486 = vmax.f32 %v483, 0.0
    %v487 = vpack.c.bf16 %v485, %v485
    %v488 = vpack.c.bf16 %v486, %v486
    %v489 = vpack.c.bf16 %v444, %v444
    %v490 = vpack.c.bf16 %v445, %v445
    %v493 = vunpack.c.l.b16 %v487
    %v494 = vunpack.c.l.b16 %v488
    %v495 = vpack.c.b16 %v494, %v493
    %v499 = vunpack.c.l.b16 %v489
    %v500 = vunpack.c.l.b16 %v490
    %v501 = vpack.c.b16 %v500, %v499
    %503 = vmatpush.bf16.msra.mxu0 %v391
    %504 = vmatpush.bf16.msra.mxu0 %v390
    %505 = vmatpush.bf16.msra.mxu0 %v389
    %506 = vmatpush.bf16.msra.mxu0 %v388
    %507 = vmatpush.bf16.msra.mxu0 %v387
    %508 = vmatpush.bf16.msra.mxu0 %v386
    %509 = vmatpush.bf16.msra.mxu0 %v385
    %510 = vmatpush.bf16.msra.mxu0 %v384
    %511 = vmatmul.bf16.gmra.mxu0 %v495
    %v512 = vpop.f32.mrf.mxu0
    %v513 = vadd.f32 %v196, %v512
    %v514 = vpop.f32.mrf.mxu0
    %v515 = vadd.f32 %v196, %v514
    %516 = vdwg.mxu0
    %517 = vmatpush.bf16.msra.mxu0 %v399
    %518 = vmatpush.bf16.msra.mxu0 %v398
    %519 = vmatpush.bf16.msra.mxu0 %v397
    %520 = vmatpush.bf16.msra.mxu0 %v396
    %521 = vmatpush.bf16.msra.mxu0 %v395
    %522 = vmatpush.bf16.msra.mxu0 %v394
    %523 = vmatpush.bf16.msra.mxu0 %v393
    %524 = vmatpush.bf16.msra.mxu0 %v392
    %525 = vmatmul.bf16.gmra.mxu0 %v501
    %v526 = vpop.f32.mrf.mxu0
    %v527 = vadd.f32 %v513, %v526
    %v528 = vpop.f32.mrf.mxu0
    %v529 = vadd.f32 %v515, %v528
    %530 = vdwg.mxu0
    %v531 = vmax.f32 %v527, 0.0
    %v532 = vmax.f32 %v529, 0.0
    %s533 = scalar_lea.vmem [#allocation4], 16
    %v534 = vld [vmem:[%s533] sm:$0xf]
    %v535 = vld [vmem:[%s533 + $0x4] sm:$0xf]
    %v538 = vunpack.c.l.b16 %v534
    %v539 = vunpack.c.l.b16 %v535
    %v540 = vpack.c.b16 %v539, %v538
    %v542 = vsel %vm221, %v540, 0
    %544 = vmatpush.bf16.msra.mxu0 0
    %545 = vmatpush.bf16.msra.mxu0 0
    %546 = vmatpush.bf16.msra.mxu0 0
    %547 = vmatpush.bf16.msra.mxu0 0
    %548 = vmatpush.bf16.msra.mxu0 0
    %549 = vmatpush.bf16.msra.mxu0 0
    %550 = vmatpush.bf16.msra.mxu0 %v218
    %551 = vmatpush.bf16.msra.mxu0 %v217
    %552 = vmatmul.bf16.gmra.mxu0 %v542
    %v553 = vpop.f32.mrf.mxu0
    %v554 = vadd.f32 0.0, %v553
    %v555 = vpop.f32.mrf.mxu0
    %v556 = vadd.f32 0.0, %v555
    %557 = vdwg.mxu0
    %558 = vmatpush.bf16.msra.mxu0 %v279
    %559 = vmatpush.bf16.msra.mxu0 %v278
    %560 = vmatpush.bf16.msra.mxu0 %v277
    %561 = vmatpush.bf16.msra.mxu0 %v276
    %562 = vmatpush.bf16.msra.mxu0 %v275
    %563 = vmatpush.bf16.msra.mxu0 %v274
    %564 = vmatpush.bf16.msra.mxu0 %v273
    %565 = vmatpush.bf16.msra.mxu0 %v272
    %566 = vmatmul.bf16.gmra.mxu0 %v495
    %v567 = vpop.f32.mrf.mxu0
    %v568 = vadd.f32 %v554, %v567
    %v569 = vpop.f32.mrf.mxu0
    %v570 = vadd.f32 %v556, %v569
    %571 = vdwg.mxu0
    %v572 = vmax.f32 %v568, 0.0
    %v573 = vmax.f32 %v570, 0.0
    %v574 = vpack.c.bf16 %v572, %v572
    %v575 = vpack.c.bf16 %v573, %v573
    %v576 = vpack.c.bf16 %v531, %v531
    %v577 = vpack.c.bf16 %v532, %v532
    %v580 = vunpack.c.l.b16 %v574
    %v581 = vunpack.c.l.b16 %v575
    %v582 = vpack.c.b16 %v581, %v580
    %v586 = vunpack.c.l.b16 %v576
    %v587 = vunpack.c.l.b16 %v577
    %v588 = vpack.c.b16 %v587, %v586
    %590 = vmatpush.bf16.msra.mxu0 %v391
    %591 = vmatpush.bf16.msra.mxu0 %v390
    %592 = vmatpush.bf16.msra.mxu0 %v389
    %593 = vmatpush.bf16.msra.mxu0 %v388
    %594 = vmatpush.bf16.msra.mxu0 %v387
    %595 = vmatpush.bf16.msra.mxu0 %v386
    %596 = vmatpush.bf16.msra.mxu0 %v385
    %597 = vmatpush.bf16.msra.mxu0 %v384
    %598 = vmatmul.bf16.gmra.mxu0 %v582
    %v599 = vpop.f32.mrf.mxu0
    %v600 = vadd.f32 %v196, %v599
    %v601 = vpop.f32.mrf.mxu0
    %v602 = vadd.f32 %v196, %v601
    %603 = vdwg.mxu0
    %604 = vmatpush.bf16.msra.mxu0 %v399
    %605 = vmatpush.bf16.msra.mxu0 %v398
    %606 = vmatpush.bf16.msra.mxu0 %v397
    %607 = vmatpush.bf16.msra.mxu0 %v396
    %608 = vmatpush.bf16.msra.mxu0 %v395
    %609 = vmatpush.bf16.msra.mxu0 %v394
    %610 = vmatpush.bf16.msra.mxu0 %v393
    %611 = vmatpush.bf16.msra.mxu0 %v392
    %612 = vmatmul.bf16.gmra.mxu0 %v588
    %v613 = vpop.f32.mrf.mxu0
    %v614 = vadd.f32 %v600, %v613
    %v615 = vpop.f32.mrf.mxu0
    %v616 = vadd.f32 %v602, %v615
    %617 = vdwg.mxu0
    %v618 = vmax.f32 %v614, 0.0
    %v619 = vmax.f32 %v616, 0.0
    %s620 = scalar_lea.vmem [#allocation4], 24
    %v621 = vld [vmem:[%s620] sm:$0xf]
    %v622 = vld [vmem:[%s620 + $0x4] sm:$0xf]
    %v625 = vunpack.c.l.b16 %v621
    %v626 = vunpack.c.l.b16 %v622
    %v627 = vpack.c.b16 %v626, %v625
    %v629 = vsel %vm221, %v627, 0
    %631 = vmatpush.bf16.msra.mxu0 0
    %632 = vmatpush.bf16.msra.mxu0 0
    %633 = vmatpush.bf16.msra.mxu0 0
    %634 = vmatpush.bf16.msra.mxu0 0
    %635 = vmatpush.bf16.msra.mxu0 0
    %636 = vmatpush.bf16.msra.mxu0 0
    %637 = vmatpush.bf16.msra.mxu0 %v218
    %638 = vmatpush.bf16.msra.mxu0 %v217
    %639 = vmatmul.bf16.gmra.mxu0 %v629
    %v640 = vpop.f32.mrf.mxu0
    %v641 = vadd.f32 0.0, %v640
    %v642 = vpop.f32.mrf.mxu0
    %v643 = vadd.f32 0.0, %v642
    %644 = vdwg.mxu0
    %645 = vmatpush.bf16.msra.mxu0 %v279
    %646 = vmatpush.bf16.msra.mxu0 %v278
    %647 = vmatpush.bf16.msra.mxu0 %v277
    %648 = vmatpush.bf16.msra.mxu0 %v276
    %649 = vmatpush.bf16.msra.mxu0 %v275
    %650 = vmatpush.bf16.msra.mxu0 %v274
    %651 = vmatpush.bf16.msra.mxu0 %v273
    %652 = vmatpush.bf16.msra.mxu0 %v272
    %653 = vmatmul.bf16.gmra.mxu0 %v582
    %v654 = vpop.f32.mrf.mxu0
    %v655 = vadd.f32 %v641, %v654
    %v656 = vpop.f32.mrf.mxu0
    %v657 = vadd.f32 %v643, %v656
    %658 = vdwg.mxu0
    %v659 = vmax.f32 %v655, 0.0
    %v660 = vmax.f32 %v657, 0.0
    %v661 = vpack.c.bf16 %v659, %v659
    %v662 = vpack.c.bf16 %v660, %v660
    %v663 = vpack.c.bf16 %v618, %v618
    %v664 = vpack.c.bf16 %v619, %v619
    %v667 = vunpack.c.l.b16 %v661
    %v668 = vunpack.c.l.b16 %v662
    %v669 = vpack.c.b16 %v668, %v667
    %v673 = vunpack.c.l.b16 %v663
    %v674 = vunpack.c.l.b16 %v664
    %v675 = vpack.c.b16 %v674, %v673
    %677 = vmatpush.bf16.msra.mxu0 %v391
    %678 = vmatpush.bf16.msra.mxu0 %v390
    %679 = vmatpush.bf16.msra.mxu0 %v389
    %680 = vmatpush.bf16.msra.mxu0 %v388
    %681 = vmatpush.bf16.msra.mxu0 %v387
    %682 = vmatpush.bf16.msra.mxu0 %v386
    %683 = vmatpush.bf16.msra.mxu0 %v385
    %684 = vmatpush.bf16.msra.mxu0 %v384
    %685 = vmatmul.bf16.gmra.mxu0 %v669
    %v686 = vpop.f32.mrf.mxu0
    %v687 = vadd.f32 %v196, %v686
    %v688 = vpop.f32.mrf.mxu0
    %v689 = vadd.f32 %v196, %v688
    %690 = vdwg.mxu0
    %691 = vmatpush.bf16.msra.mxu0 %v399
    %692 = vmatpush.bf16.msra.mxu0 %v398
    %693 = vmatpush.bf16.msra.mxu0 %v397
    %694 = vmatpush.bf16.msra.mxu0 %v396
    %695 = vmatpush.bf16.msra.mxu0 %v395
    %696 = vmatpush.bf16.msra.mxu0 %v394
    %697 = vmatpush.bf16.msra.mxu0 %v393
    %698 = vmatpush.bf16.msra.mxu0 %v392
    %699 = vmatmul.bf16.gmra.mxu0 %v675
    %v700 = vpop.f32.mrf.mxu0
    %v701 = vadd.f32 %v687, %v700
    %v702 = vpop.f32.mrf.mxu0
    %v703 = vadd.f32 %v689, %v702
    %704 = vdwg.mxu0
    %v705 = vmax.f32 %v701, 0.0
    %v706 = vmax.f32 %v703, 0.0
    %s707 = scalar_lea.vmem [#allocation4], 32
    %v708 = vld [vmem:[%s707] sm:$0xf]
    %v709 = vld [vmem:[%s707 + $0x4] sm:$0xf]
    %v712 = vunpack.c.l.b16 %v708
    %v713 = vunpack.c.l.b16 %v709
    %v714 = vpack.c.b16 %v713, %v712
    %v716 = vsel %vm221, %v714, 0
    %718 = vmatpush.bf16.msra.mxu0 0
    %719 = vmatpush.bf16.msra.mxu0 0
    %720 = vmatpush.bf16.msra.mxu0 0
    %721 = vmatpush.bf16.msra.mxu0 0
    %722 = vmatpush.bf16.msra.mxu0 0
    %723 = vmatpush.bf16.msra.mxu0 0
    %724 = vmatpush.bf16.msra.mxu0 %v218
    %725 = vmatpush.bf16.msra.mxu0 %v217
    %726 = vmatmul.bf16.gmra.mxu0 %v716
    %v727 = vpop.f32.mrf.mxu0
    %v728 = vadd.f32 0.0, %v727
    %v729 = vpop.f32.mrf.mxu0
    %v730 = vadd.f32 0.0, %v729
    %731 = vdwg.mxu0
    %732 = vmatpush.bf16.msra.mxu0 %v279
    %733 = vmatpush.bf16.msra.mxu0 %v278
    %734 = vmatpush.bf16.msra.mxu0 %v277
    %735 = vmatpush.bf16.msra.mxu0 %v276
    %736 = vmatpush.bf16.msra.mxu0 %v275
    %737 = vmatpush.bf16.msra.mxu0 %v274
    %738 = vmatpush.bf16.msra.mxu0 %v273
    %739 = vmatpush.bf16.msra.mxu0 %v272
    %740 = vmatmul.bf16.gmra.mxu0 %v669
    %v741 = vpop.f32.mrf.mxu0
    %v742 = vadd.f32 %v728, %v741
    %v743 = vpop.f32.mrf.mxu0
    %v744 = vadd.f32 %v730, %v743
    %745 = vdwg.mxu0
    %v746 = vmax.f32 %v742, 0.0
    %v747 = vmax.f32 %v744, 0.0
    %v748 = vpack.c.bf16 %v746, %v746
    %v749 = vpack.c.bf16 %v747, %v747
    %v750 = vpack.c.bf16 %v705, %v705
    %v751 = vpack.c.bf16 %v706, %v706
    %v754 = vunpack.c.l.b16 %v748
    %v755 = vunpack.c.l.b16 %v749
    %v756 = vpack.c.b16 %v755, %v754
    %v760 = vunpack.c.l.b16 %v750
    %v761 = vunpack.c.l.b16 %v751
    %v762 = vpack.c.b16 %v761, %v760
    %764 = vmatpush.bf16.msra.mxu0 %v391
    %765 = vmatpush.bf16.msra.mxu0 %v390
    %766 = vmatpush.bf16.msra.mxu0 %v389
    %767 = vmatpush.bf16.msra.mxu0 %v388
    %768 = vmatpush.bf16.msra.mxu0 %v387
    %769 = vmatpush.bf16.msra.mxu0 %v386
    %770 = vmatpush.bf16.msra.mxu0 %v385
    %771 = vmatpush.bf16.msra.mxu0 %v384
    %772 = vmatmul.bf16.gmra.mxu0 %v756
    %v773 = vpop.f32.mrf.mxu0
    %v774 = vadd.f32 %v196, %v773
    %v775 = vpop.f32.mrf.mxu0
    %v776 = vadd.f32 %v196, %v775
    %777 = vdwg.mxu0
    %778 = vmatpush.bf16.msra.mxu0 %v399
    %779 = vmatpush.bf16.msra.mxu0 %v398
    %780 = vmatpush.bf16.msra.mxu0 %v397
    %781 = vmatpush.bf16.msra.mxu0 %v396
    %782 = vmatpush.bf16.msra.mxu0 %v395
    %783 = vmatpush.bf16.msra.mxu0 %v394
    %784 = vmatpush.bf16.msra.mxu0 %v393
    %785 = vmatpush.bf16.msra.mxu0 %v392
    %786 = vmatmul.bf16.gmra.mxu0 %v762
    %v787 = vpop.f32.mrf.mxu0
    %v788 = vadd.f32 %v774, %v787
    %v789 = vpop.f32.mrf.mxu0
    %v790 = vadd.f32 %v776, %v789
    %791 = vdwg.mxu0
    %v792 = vmax.f32 %v788, 0.0
    %v793 = vmax.f32 %v790, 0.0
    %s794 = scalar_lea.vmem [#allocation4], 40
    %v795 = vld [vmem:[%s794] sm:$0xf]
    %v796 = vld [vmem:[%s794 + $0x4] sm:$0xf]
    %v799 = vunpack.c.l.b16 %v795
    %v800 = vunpack.c.l.b16 %v796
    %v801 = vpack.c.b16 %v800, %v799
    %v803 = vsel %vm221, %v801, 0
    %805 = vmatpush.bf16.msra.mxu0 0
    %806 = vmatpush.bf16.msra.mxu0 0
    %807 = vmatpush.bf16.msra.mxu0 0
    %808 = vmatpush.bf16.msra.mxu0 0
    %809 = vmatpush.bf16.msra.mxu0 0
    %810 = vmatpush.bf16.msra.mxu0 0
    %811 = vmatpush.bf16.msra.mxu0 %v218
    %812 = vmatpush.bf16.msra.mxu0 %v217
    %813 = vmatmul.bf16.gmra.mxu0 %v803
    %v814 = vpop.f32.mrf.mxu0
    %v815 = vadd.f32 0.0, %v814
    %v816 = vpop.f32.mrf.mxu0
    %v817 = vadd.f32 0.0, %v816
    %818 = vdwg.mxu0
    %819 = vmatpush.bf16.msra.mxu0 %v279
    %820 = vmatpush.bf16.msra.mxu0 %v278
    %821 = vmatpush.bf16.msra.mxu0 %v277
    %822 = vmatpush.bf16.msra.mxu0 %v276
    %823 = vmatpush.bf16.msra.mxu0 %v275
    %824 = vmatpush.bf16.msra.mxu0 %v274
    %825 = vmatpush.bf16.msra.mxu0 %v273
    %826 = vmatpush.bf16.msra.mxu0 %v272
    %827 = vmatmul.bf16.gmra.mxu0 %v756
    %v828 = vpop.f32.mrf.mxu0
    %v829 = vadd.f32 %v815, %v828
    %v830 = vpop.f32.mrf.mxu0
    %v831 = vadd.f32 %v817, %v830
    %832 = vdwg.mxu0
    %v833 = vmax.f32 %v829, 0.0
    %v834 = vmax.f32 %v831, 0.0
    %v835 = vpack.c.bf16 %v833, %v833
    %v836 = vpack.c.bf16 %v834, %v834
    %v837 = vpack.c.bf16 %v792, %v792
    %v838 = vpack.c.bf16 %v793, %v793
    %v841 = vunpack.c.l.b16 %v835
    %v842 = vunpack.c.l.b16 %v836
    %v843 = vpack.c.b16 %v842, %v841
    %v847 = vunpack.c.l.b16 %v837
    %v848 = vunpack.c.l.b16 %v838
    %v849 = vpack.c.b16 %v848, %v847
    %851 = vmatpush.bf16.msra.mxu0 %v391
    %852 = vmatpush.bf16.msra.mxu0 %v390
    %853 = vmatpush.bf16.msra.mxu0 %v389
    %854 = vmatpush.bf16.msra.mxu0 %v388
    %855 = vmatpush.bf16.msra.mxu0 %v387
    %856 = vmatpush.bf16.msra.mxu0 %v386
    %857 = vmatpush.bf16.msra.mxu0 %v385
    %858 = vmatpush.bf16.msra.mxu0 %v384
    %859 = vmatmul.bf16.gmra.mxu0 %v843
    %v860 = vpop.f32.mrf.mxu0
    %v861 = vadd.f32 %v196, %v860
    %v862 = vpop.f32.mrf.mxu0
    %v863 = vadd.f32 %v196, %v862
    %864 = vdwg.mxu0
    %865 = vmatpush.bf16.msra.mxu0 %v399
    %866 = vmatpush.bf16.msra.mxu0 %v398
    %867 = vmatpush.bf16.msra.mxu0 %v397
    %868 = vmatpush.bf16.msra.mxu0 %v396
    %869 = vmatpush.bf16.msra.mxu0 %v395
    %870 = vmatpush.bf16.msra.mxu0 %v394
    %871 = vmatpush.bf16.msra.mxu0 %v393
    %872 = vmatpush.bf16.msra.mxu0 %v392
    %873 = vmatmul.bf16.gmra.mxu0 %v849
    %v874 = vpop.f32.mrf.mxu0
    %v875 = vadd.f32 %v861, %v874
    %v876 = vpop.f32.mrf.mxu0
    %v877 = vadd.f32 %v863, %v876
    %878 = vdwg.mxu0
    %v879 = vmax.f32 %v875, 0.0
    %v880 = vmax.f32 %v877, 0.0
    %s881 = scalar_lea.vmem [#allocation4], 48
    %v882 = vld [vmem:[%s881] sm:$0xf]
    %v883 = vld [vmem:[%s881 + $0x4] sm:$0xf]
    %v886 = vunpack.c.l.b16 %v882
    %v887 = vunpack.c.l.b16 %v883
    %v888 = vpack.c.b16 %v887, %v886
    %v890 = vsel %vm221, %v888, 0
    %892 = vmatpush.bf16.msra.mxu0 0
    %893 = vmatpush.bf16.msra.mxu0 0
    %894 = vmatpush.bf16.msra.mxu0 0
    %895 = vmatpush.bf16.msra.mxu0 0
    %896 = vmatpush.bf16.msra.mxu0 0
    %897 = vmatpush.bf16.msra.mxu0 0
    %898 = vmatpush.bf16.msra.mxu0 %v218
    %899 = vmatpush.bf16.msra.mxu0 %v217
    %900 = vmatmul.bf16.gmra.mxu0 %v890
    %v901 = vpop.f32.mrf.mxu0
    %v902 = vadd.f32 0.0, %v901
    %v903 = vpop.f32.mrf.mxu0
    %v904 = vadd.f32 0.0, %v903
    %905 = vdwg.mxu0
    %906 = vmatpush.bf16.msra.mxu0 %v279
    %907 = vmatpush.bf16.msra.mxu0 %v278
    %908 = vmatpush.bf16.msra.mxu0 %v277
    %909 = vmatpush.bf16.msra.mxu0 %v276
    %910 = vmatpush.bf16.msra.mxu0 %v275
    %911 = vmatpush.bf16.msra.mxu0 %v274
    %912 = vmatpush.bf16.msra.mxu0 %v273
    %913 = vmatpush.bf16.msra.mxu0 %v272
    %914 = vmatmul.bf16.gmra.mxu0 %v843
    %v915 = vpop.f32.mrf.mxu0
    %v916 = vadd.f32 %v902, %v915
    %v917 = vpop.f32.mrf.mxu0
    %v918 = vadd.f32 %v904, %v917
    %919 = vdwg.mxu0
    %v920 = vmax.f32 %v916, 0.0
    %v921 = vmax.f32 %v918, 0.0
    %v922 = vpack.c.bf16 %v920, %v920
    %v923 = vpack.c.bf16 %v921, %v921
    %v924 = vpack.c.bf16 %v879, %v879
    %v925 = vpack.c.bf16 %v880, %v880
    %v928 = vunpack.c.l.b16 %v922
    %v929 = vunpack.c.l.b16 %v923
    %v930 = vpack.c.b16 %v929, %v928
    %v934 = vunpack.c.l.b16 %v924
    %v935 = vunpack.c.l.b16 %v925
    %v936 = vpack.c.b16 %v935, %v934
    %938 = vmatpush.bf16.msra.mxu0 %v391
    %939 = vmatpush.bf16.msra.mxu0 %v390
    %940 = vmatpush.bf16.msra.mxu0 %v389
    %941 = vmatpush.bf16.msra.mxu0 %v388
    %942 = vmatpush.bf16.msra.mxu0 %v387
    %943 = vmatpush.bf16.msra.mxu0 %v386
    %944 = vmatpush.bf16.msra.mxu0 %v385
    %945 = vmatpush.bf16.msra.mxu0 %v384
    %946 = vmatmul.bf16.gmra.mxu0 %v930
    %v947 = vpop.f32.mrf.mxu0
    %v948 = vadd.f32 %v196, %v947
    %v949 = vpop.f32.mrf.mxu0
    %v950 = vadd.f32 %v196, %v949
    %951 = vdwg.mxu0
    %952 = vmatpush.bf16.msra.mxu0 %v399
    %953 = vmatpush.bf16.msra.mxu0 %v398
    %954 = vmatpush.bf16.msra.mxu0 %v397
    %955 = vmatpush.bf16.msra.mxu0 %v396
    %956 = vmatpush.bf16.msra.mxu0 %v395
    %957 = vmatpush.bf16.msra.mxu0 %v394
    %958 = vmatpush.bf16.msra.mxu0 %v393
    %959 = vmatpush.bf16.msra.mxu0 %v392
    %960 = vmatmul.bf16.gmra.mxu0 %v936
    %v961 = vpop.f32.mrf.mxu0
    %v962 = vadd.f32 %v948, %v961
    %v963 = vpop.f32.mrf.mxu0
    %v964 = vadd.f32 %v950, %v963
    %965 = vdwg.mxu0
    %v966 = vmax.f32 %v962, 0.0
    %v967 = vmax.f32 %v964, 0.0
    %s968 = scalar_lea.vmem [#allocation4], 56
    %v969 = vld [vmem:[%s968] sm:$0xf]
    %v970 = vld [vmem:[%s968 + $0x4] sm:$0xf]
    %v973 = vunpack.c.l.b16 %v969
    %v974 = vunpack.c.l.b16 %v970
    %v975 = vpack.c.b16 %v974, %v973
    %v977 = vsel %vm221, %v975, 0
    %979 = vmatpush.bf16.msra.mxu0 0
    %980 = vmatpush.bf16.msra.mxu0 0
    %981 = vmatpush.bf16.msra.mxu0 0
    %982 = vmatpush.bf16.msra.mxu0 0
    %983 = vmatpush.bf16.msra.mxu0 0
    %984 = vmatpush.bf16.msra.mxu0 0
    %985 = vmatpush.bf16.msra.mxu0 %v218
    %986 = vmatpush.bf16.msra.mxu0 %v217
    %987 = vmatmul.bf16.gmra.mxu0 %v977
    %v988 = vpop.f32.mrf.mxu0
    %v989 = vadd.f32 0.0, %v988
    %v990 = vpop.f32.mrf.mxu0
    %v991 = vadd.f32 0.0, %v990
    %992 = vdwg.mxu0
    %993 = vmatpush.bf16.msra.mxu0 %v279
    %994 = vmatpush.bf16.msra.mxu0 %v278
    %995 = vmatpush.bf16.msra.mxu0 %v277
    %996 = vmatpush.bf16.msra.mxu0 %v276
    %997 = vmatpush.bf16.msra.mxu0 %v275
    %998 = vmatpush.bf16.msra.mxu0 %v274
    %999 = vmatpush.bf16.msra.mxu0 %v273
    %1000 = vmatpush.bf16.msra.mxu0 %v272
    %1001 = vmatmul.bf16.gmra.mxu0 %v930
    %v1002 = vpop.f32.mrf.mxu0
    %v1003 = vadd.f32 %v989, %v1002
    %v1004 = vpop.f32.mrf.mxu0
    %v1005 = vadd.f32 %v991, %v1004
    %1006 = vdwg.mxu0
    %v1007 = vmax.f32 %v1003, 0.0
    %v1008 = vmax.f32 %v1005, 0.0
    %v1009 = vpack.c.bf16 %v1007, %v1007
    %v1010 = vpack.c.bf16 %v1008, %v1008
    %v1011 = vpack.c.bf16 %v966, %v966
    %v1012 = vpack.c.bf16 %v967, %v967
    %v1015 = vunpack.c.l.b16 %v1009
    %v1016 = vunpack.c.l.b16 %v1010
    %v1017 = vpack.c.b16 %v1016, %v1015
    %v1021 = vunpack.c.l.b16 %v1011
    %v1022 = vunpack.c.l.b16 %v1012
    %v1023 = vpack.c.b16 %v1022, %v1021
    %1025 = vmatpush.bf16.msra.mxu0 %v391
    %1026 = vmatpush.bf16.msra.mxu0 %v390
    %1027 = vmatpush.bf16.msra.mxu0 %v389
    %1028 = vmatpush.bf16.msra.mxu0 %v388
    %1029 = vmatpush.bf16.msra.mxu0 %v387
    %1030 = vmatpush.bf16.msra.mxu0 %v386
    %1031 = vmatpush.bf16.msra.mxu0 %v385
    %1032 = vmatpush.bf16.msra.mxu0 %v384
    %1033 = vmatmul.bf16.gmra.mxu0 %v1017
    %v1034 = vpop.f32.mrf.mxu0
    %v1035 = vadd.f32 %v196, %v1034
    %v1036 = vpop.f32.mrf.mxu0
    %v1037 = vadd.f32 %v196, %v1036
    %1038 = vdwg.mxu0
    %1039 = vmatpush.bf16.msra.mxu0 %v399
    %1040 = vmatpush.bf16.msra.mxu0 %v398
    %1041 = vmatpush.bf16.msra.mxu0 %v397
    %1042 = vmatpush.bf16.msra.mxu0 %v396
    %1043 = vmatpush.bf16.msra.mxu0 %v395
    %1044 = vmatpush.bf16.msra.mxu0 %v394
    %1045 = vmatpush.bf16.msra.mxu0 %v393
    %1046 = vmatpush.bf16.msra.mxu0 %v392
    %1047 = vmatmul.bf16.gmra.mxu0 %v1023
    %v1048 = vpop.f32.mrf.mxu0
    %v1049 = vadd.f32 %v1035, %v1048
    %v1050 = vpop.f32.mrf.mxu0
    %v1051 = vadd.f32 %v1037, %v1050
    %1052 = vdwg.mxu0
    %v1053 = vmax.f32 %v1049, 0.0
    %v1054 = vmax.f32 %v1051, 0.0
    %1055 = vst [vmem:[#allocation2] sm:$0xff] %v1007
    %1056 = vst [vmem:[#allocation2 + $0x8] sm:$0xff] %v1008
    %1057 = vst [vmem:[#allocation3] sm:$0xff] %v1053
    %1058 = vst [vmem:[#allocation3 + $0x8] sm:$0xff] %v1054
    // Predicated region
    $region74: #{tpu_custom_call.1} parent=1 // pred_check
      %p1059 = pneg %p134
    $region75: #{tpu_custom_call.1} parent=1 // pred_check_branch
      %1061 = sbr.rel (%p1059) target = $region77
    $region76: #{tpu_custom_call.1} parent=1 // pred_region
      %1062 = vadd.xlane.f32.xlu0 %v1053
      %v1063 = vpop.xlane.xlu0 %1062
      %1064 = vadd.xlane.f32.xlu0 %v1054
      %v1065 = vpop.xlane.xlu0 %1064
      %v1066 = vrcp.pop 128.0
      %v1067 = vmul.f32 128.0, %v1066
      %v1068 = vsub.f32 1.0, %v1067
      %v1069 = vmul.f32 %v1066, %v1068
      %v1070 = vadd.f32 %v1066, %v1069
      %vm1071 = vweird.f32 %v1066
      %v1072 = vsel %vm1071, %v1066, %v1070
      %v1073 = vmul.f32 %v1063, %v1072
      %v1074 = vmul.f32 %v1065, %v1072
      %v1075 = vsub.f32 %v1053, %v1073
      %v1076 = vsub.f32 %v1054, %v1074
      %v1077 = vmul.f32 %v1075, %v1075
      %v1078 = vmul.f32 %v1076, %v1076
      %1079 = vadd.xlane.f32.xlu0 %v1077
      %v1080 = vpop.xlane.xlu0 %1079
      %1081 = vadd.xlane.f32.xlu0 %v1078
      %v1082 = vpop.xlane.xlu0 %1081
      %v1083 = vmul.f32 %v1080, %v1072
      %v1084 = vmul.f32 %v1082, %v1072
      %v1085 = vadd.f32 %v1083, 1e-05
      %v1086 = vadd.f32 %v1084, 1e-05
      %v1087 = vrsqrt.pop %v1085
      %v1088 = vmul.f32 %v1087, %v1085
      %v1089 = vmul.f32 %v1088, %v1087
      %v1090 = vmul.f32 0.5, %v1089
      %v1091 = vsub.f32 1.5, %v1090
      %v1092 = vmul.f32 %v1087, %v1091
      %vm1093 = vweird.f32 %v1085
      %vm1094 = vweird.f32 %v1087
      %vm1095 = vmor %vm1093, %vm1094
      %v1096 = vsel %vm1095, %v1087, %v1092
      %v1097 = vrsqrt.pop %v1086
      %v1098 = vmul.f32 %v1097, %v1086
      %v1099 = vmul.f32 %v1098, %v1097
      %v1100 = vmul.f32 0.5, %v1099
      %v1101 = vsub.f32 1.5, %v1100
      %v1102 = vmul.f32 %v1097, %v1101
      %vm1103 = vweird.f32 %v1086
      %vm1104 = vweird.f32 %v1097
      %vm1105 = vmor %vm1103, %vm1104
      %v1106 = vsel %vm1105, %v1097, %v1102
      %v1107 = vmul.f32 %v1075, %v1096
      %v1108 = vmul.f32 %v1076, %v1106
      %v1109 = vld [vmem:[%s5] sm:$0x1]
      %v1111 = vperm.slane %v1109, 0
      %v1113 = vmul.f32 %v1107, %v1111
      %v1114 = vmul.f32 %v1108, %v1111
      %v1115 = vld [vmem:[%s6] sm:$0x1]
      %v1117 = vperm.slane %v1115, 0
      %v1119 = vadd.f32 %v1113, %v1117
      %v1120 = vadd.f32 %v1114, %v1117
      %v1121 = vpack.c.bf16 %v1120, %v1119
      %v1122 = vld [vmem:[#allocation12] sm:$0xf]
      %v1123 = vld [vmem:[#allocation12 + $0x4] sm:$0xf]
      %v1124 = vld [vmem:[#allocation12 + $0x8] sm:$0xf]
      %v1125 = vld [vmem:[#allocation12 + $0xc] sm:$0xf]
      %v1126 = vld [vmem:[#allocation12 + $0x10] sm:$0xf]
      %v1127 = vld [vmem:[#allocation12 + $0x14] sm:$0xf]
      %v1128 = vld [vmem:[#allocation12 + $0x18] sm:$0xf]
      %v1129 = vld [vmem:[#allocation12 + $0x1c] sm:$0xf]
      %v1130 = vld [vmem:[#allocation12 + $0x20] sm:$0xf]
      %v1131 = vld [vmem:[#allocation12 + $0x24] sm:$0xf]
      %v1132 = vld [vmem:[#allocation12 + $0x28] sm:$0xf]
      %v1133 = vld [vmem:[#allocation12 + $0x2c] sm:$0xf]
      %v1134 = vld [vmem:[#allocation12 + $0x30] sm:$0xf]
      %v1135 = vld [vmem:[#allocation12 + $0x34] sm:$0xf]
      %v1136 = vld [vmem:[#allocation12 + $0x38] sm:$0xf]
      %v1137 = vld [vmem:[#allocation12 + $0x3c] sm:$0xf]
      %v1138 = vld [vmem:[%s8] sm:$0x1]
      %v1140 = vperm.slane %v1138, 0
      %v1158 = vunpack.c.l.b16 %v1122
      %v1159 = vunpack.c.l.b16 %v1123
      %v1160 = vunpack.c.l.b16 %v1124
      %v1161 = vunpack.c.l.b16 %v1125
      %v1162 = vunpack.c.l.b16 %v1126
      %v1163 = vunpack.c.l.b16 %v1127
      %v1164 = vunpack.c.l.b16 %v1128
      %v1165 = vunpack.c.l.b16 %v1129
      %v1166 = vunpack.c.l.b16 %v1130
      %v1167 = vunpack.c.l.b16 %v1131
      %v1168 = vunpack.c.l.b16 %v1132
      %v1169 = vunpack.c.l.b16 %v1133
      %v1170 = vunpack.c.l.b16 %v1134
      %v1171 = vunpack.c.l.b16 %v1135
      %v1172 = vunpack.c.l.b16 %v1136
      %v1173 = vunpack.c.l.b16 %v1137
      %v1174 = vpack.c.b16 %v1159, %v1158
      %v1175 = vpack.c.b16 %v1161, %v1160
      %v1176 = vpack.c.b16 %v1163, %v1162
      %v1177 = vpack.c.b16 %v1165, %v1164
      %v1178 = vpack.c.b16 %v1167, %v1166
      %v1179 = vpack.c.b16 %v1169, %v1168
      %v1180 = vpack.c.b16 %v1171, %v1170
      %v1181 = vpack.c.b16 %v1173, %v1172
      %1190 = vmatpush.bf16.msra.mxu0 %v1181
      %1191 = vmatpush.bf16.msra.mxu0 %v1180
      %1192 = vmatpush.bf16.msra.mxu0 %v1179
      %1193 = vmatpush.bf16.msra.mxu0 %v1178
      %1194 = vmatpush.bf16.msra.mxu0 %v1177
      %1195 = vmatpush.bf16.msra.mxu0 %v1176
      %1196 = vmatpush.bf16.msra.mxu0 %v1175
      %1197 = vmatpush.bf16.msra.mxu0 %v1174
      %1198 = vmatmul.bf16.gmra.mxu0 %v1121
      %v1199 = vpop.f32.mrf.mxu0
      %v1200 = vadd.f32 %v1140, %v1199
      %v1201 = vpop.f32.mrf.mxu0
      %v1202 = vadd.f32 %v1140, %v1201
      %1203 = vdwg.mxu0
      %v1204 = vmax.f32 %v1200, 0.0
      %v1205 = vmax.f32 %v1202, 0.0
      %v1206 = vpack.c.bf16 %v1205, %v1204
      %v1207 = vld [vmem:[#allocation13] sm:$0xf]
      %v1208 = vld [vmem:[#allocation13 + $0x4] sm:$0xf]
      %v1209 = vld [vmem:[#allocation13 + $0x8] sm:$0xf]
      %v1210 = vld [vmem:[#allocation13 + $0xc] sm:$0xf]
      %v1211 = vld [vmem:[#allocation13 + $0x10] sm:$0xf]
      %v1212 = vld [vmem:[#allocation13 + $0x14] sm:$0xf]
      %v1213 = vld [vmem:[#allocation13 + $0x18] sm:$0xf]
      %v1214 = vld [vmem:[#allocation13 + $0x1c] sm:$0xf]
      %v1215 = vld [vmem:[#allocation13 + $0x20] sm:$0xf]
      %v1216 = vld [vmem:[#allocation13 + $0x24] sm:$0xf]
      %v1217 = vld [vmem:[#allocation13 + $0x28] sm:$0xf]
      %v1218 = vld [vmem:[#allocation13 + $0x2c] sm:$0xf]
      %v1219 = vld [vmem:[#allocation13 + $0x30] sm:$0xf]
      %v1220 = vld [vmem:[#allocation13 + $0x34] sm:$0xf]
      %v1221 = vld [vmem:[#allocation13 + $0x38] sm:$0xf]
      %v1222 = vld [vmem:[#allocation13 + $0x3c] sm:$0xf]
      %v1223 = vld [vmem:[%s10] sm:$0x1]
      %v1225 = vperm.slane %v1223, 0
      %v1243 = vunpack.c.l.b16 %v1207
      %v1244 = vunpack.c.l.b16 %v1208
      %v1245 = vunpack.c.l.b16 %v1209
      %v1246 = vunpack.c.l.b16 %v1210
      %v1247 = vunpack.c.l.b16 %v1211
      %v1248 = vunpack.c.l.b16 %v1212
      %v1249 = vunpack.c.l.b16 %v1213
      %v1250 = vunpack.c.l.b16 %v1214
      %v1251 = vunpack.c.l.b16 %v1215
      %v1252 = vunpack.c.l.b16 %v1216
      %v1253 = vunpack.c.l.b16 %v1217
      %v1254 = vunpack.c.l.b16 %v1218
      %v1255 = vunpack.c.l.b16 %v1219
      %v1256 = vunpack.c.l.b16 %v1220
      %v1257 = vunpack.c.l.b16 %v1221
      %v1258 = vunpack.c.l.b16 %v1222
      %v1259 = vpack.c.b16 %v1244, %v1243
      %v1260 = vpack.c.b16 %v1246, %v1245
      %v1261 = vpack.c.b16 %v1248, %v1247
      %v1262 = vpack.c.b16 %v1250, %v1249
      %v1263 = vpack.c.b16 %v1252, %v1251
      %v1264 = vpack.c.b16 %v1254, %v1253
      %v1265 = vpack.c.b16 %v1256, %v1255
      %v1266 = vpack.c.b16 %v1258, %v1257
      %1275 = vmatpush.bf16.msra.mxu0 %v1266
      %1276 = vmatpush.bf16.msra.mxu0 %v1265
      %1277 = vmatpush.bf16.msra.mxu0 %v1264
      %1278 = vmatpush.bf16.msra.mxu0 %v1263
      %1279 = vmatpush.bf16.msra.mxu0 %v1262
      %1280 = vmatpush.bf16.msra.mxu0 %v1261
      %1281 = vmatpush.bf16.msra.mxu0 %v1260
      %1282 = vmatpush.bf16.msra.mxu0 %v1259
      %1283 = vmatmul.bf16.gmra.mxu0 %v1206
      %v1284 = vpop.f32.mrf.mxu0
      %v1285 = vadd.f32 %v1225, %v1284
      %v1286 = vpop.f32.mrf.mxu0
      %v1287 = vadd.f32 %v1225, %v1286
      %1288 = vdwg.mxu0
      %1289 = vst [vmem:[#allocation15] sm:$0xff] %v1285
      %1290 = vst [vmem:[#allocation15 + $0x8] sm:$0xff] %v1287
    $region77: #{tpu_custom_call.1} parent=1 // pred_fallthru
      _
    // Predicated region
    $region78: #{tpu_custom_call.1} parent=1 // pred_check
      _
    $region79: #{tpu_custom_call.1} parent=1 // pred_check_branch
      %1292 = sbr.rel (0) target = $region81
    $region80: #{tpu_custom_call.1} parent=1 // pred_region
      %1294 = vsyncadd [#allocation6], 0
      %s1295 = sshll.u32 [#allocation15], 4
      %s1296 = int_to_ptr.vmem [resolvable:$true] %s1295
      %s1297 = sshll.u32 %s11, 4
      %s1298 = int_to_ptr.hbm [resolvable:$true] %s1297
      %1303 = dma.vmem_to_hbm [thread:$0]  %s1296, 256, %s1298, [#allocation6], 128, 128, 8
    $region81: #{tpu_custom_call.1} parent=1 // pred_fallthru
      _
    // Predicated region
    $region82: #{tpu_custom_call.1} parent=1 // pred_check
      _
    $region83: #{tpu_custom_call.1} parent=1 // pred_check_branch
      %1305 = sbr.rel (0) target = $region85
    $region84: #{tpu_custom_call.1} parent=1 // pred_region
      %1307 = dma.done [#allocation6], 256
    $region85: #{tpu_custom_call.1} parent=1 // pred_fallthru
      _
    %1308 = vsyncpa [#allocation5], 1
    %1309 = vsyncpa [#allocation8], 1
    %1310 = vsyncpa [#allocation11], 1
    %1311 = vsyncpa [#allocation14], 1
    %1312 = vsyncpa [#allocation6], 1

</llo_original>
